<compile_context>
chip_gen: v5e
topology: v5e:2x2
jax: 0.10.0
libtpu: 0.0.40
codegen_flags: <defaults>
</compile_context>

<pallas_src>
import functools

import jax
import jax.numpy as jnp
from jax import lax
from jax.experimental import pallas as pl
from jax.experimental.pallas import tpu as pltpu


# ------------------------------------------------------------------
# Kernel 1: fused 3x3 conv (in-kernel im2col over 3 shifted views)
#           + BatchNorm batch statistics (sum / sum-of-squares)
# ------------------------------------------------------------------
def conv_bnstats_kernel(v0_ref, v1_ref, v2_ref, w_ref, y_ref, stats_ref, *, W):
    # v{kw}_ref : (1, C_in, (H+2)*W)  column-shift kw of the reflection-padded
    #                                 input, rows flattened (channel-major).
    # w_ref     : (9, c_blk, C_in)    weight taps, tap index t = kh*3 + kw.
    # y_ref     : (1, c_blk, H*W)     conv output (channel-major, lane-dense).
    # stats_ref : (1, c_blk, 2)       per-channel [sum, sum-of-squares].
    c_blk = y_ref.shape[1]
    HW = y_ref.shape[2]
    acc = jnp.zeros((c_blk, HW), jnp.float32)
    for kw, v_ref in enumerate((v0_ref, v1_ref, v2_ref)):
        for kh in range(3):
            # row shift kh == static offset kh*W on the flattened spatial axis.
            xs = v_ref[0, :, kh * W:kh * W + HW]            # (C_in, H*W)
            acc = acc + jnp.dot(w_ref[kh * 3 + kw], xs,
                                preferred_element_type=jnp.float32)
    y_ref[0] = acc
    # Fused BN batch-statistics: per-channel sum and sum of squares (lane reduce).
    stats_ref[0, :, 0:1] = jnp.sum(acc, axis=1, keepdims=True)
    stats_ref[0, :, 1:2] = jnp.sum(acc * acc, axis=1, keepdims=True)


# ------------------------------------------------------------------
# Kernel 2: BatchNorm normalize (pre-folded scale/shift) + ReLU, lane-dense
# ------------------------------------------------------------------
def bn_relu_kernel(x_ref, scale_ref, shift_ref, o_ref):
    # x_ref: (1, c_blk, H*W); scale/shift: (c_blk, 1) -> broadcast along lanes.
    y = x_ref[0] * scale_ref[...] + shift_ref[...]
    o_ref[0] = jnp.maximum(y, 0.0)


# ------------------------------------------------------------------
# Full ConvUnit forward
# ------------------------------------------------------------------
def conv_unit_forward(x, params, *, ksz=3, padding=1, eps=1e-5, c_blk=32):
    """x: (N, C_in, H, W) float32, NCHW (PyTorch convention)."""
    if ksz != 3 or padding != 1:
        raise NotImplementedError("kernel is specialized to ksz=3, padding=1")
    w = params["conv_w"]                     # (C_out, C_in, 3, 3)
    gamma = params["bn_gamma"]
    beta = params["bn_beta"]
    # params["conv_b"] is intentionally unused: a per-channel conv bias is
    # cancelled exactly by training-mode BatchNorm's mean subtraction.

    N, C_in, H, W = x.shape
    C_out = w.shape[0]
    if C_out % c_blk != 0:
        c_blk = C_out
    n_cb = C_out // c_blk
    HW = H * W
    HWP = (H + 2 * padding) * W              # padded rows x valid cols, flattened

    # ReflectionPad2d(1) (glue). NCHW is kept throughout -> no transposes anywhere.
    xp = jnp.pad(
        x, ((0, 0), (0, 0), (padding, padding), (padding, padding)), mode="reflect"
    )                                        # (N, C_in, H+2, W+2)

    # Three column-shifted views with rows flattened:
    #   v[kw][n, ci, h*W + w] = xp[n, ci, h, w + kw]
    # Only C_in(=3)-wide -> negligible HBM traffic; they let the kernel build all
    # 9 taps with static in-block slices (offset kh*W), so the 27-wide im2col
    # tensor is never materialized in HBM.
    v = [xp[:, :, :, kw:kw + W].reshape(N, C_in, HWP) for kw in range(ksz)]

    # Weight taps: (kh*3+kw, C_out, C_in)
    w_taps = jnp.transpose(w, (2, 3, 0, 1)).reshape(ksz * ksz, C_out, C_in)

    # --- Pallas kernel 1: conv + fused BN statistics ---
    # TODO(synk): for very large H*W, add a spatial (row) tile axis with halo
    # handling; whole-image blocks are comfortably within VMEM at these sizes.
    kern = functools.partial(conv_bnstats_kernel, W=W)
    y_flat, stats = pl.pallas_call(
        kern,
        out_shape=(
            jax.ShapeDtypeStruct((N, C_out, HW), jnp.float32),
            jax.ShapeDtypeStruct((N, C_out, 2), jnp.float32),
        ),
        grid_spec=pltpu.PrefetchScalarGridSpec(
            num_scalar_prefetch=0,
            grid=(N, n_cb),
            in_specs=[
                pl.BlockSpec((1, C_in, HWP), lambda n, j: (n, 0, 0)),
                pl.BlockSpec((1, C_in, HWP), lambda n, j: (n, 0, 0)),
                pl.BlockSpec((1, C_in, HWP), lambda n, j: (n, 0, 0)),
                pl.BlockSpec((ksz * ksz, c_blk, C_in), lambda n, j: (0, j, 0)),
            ],
            out_specs=[
                pl.BlockSpec((1, c_blk, HW), lambda n, j: (n, j, 0)),
                pl.BlockSpec((1, c_blk, 2), lambda n, j: (n, j, 0)),
            ],
        ),
        compiler_params=pltpu.CompilerParams(
            dimension_semantics=("parallel", "parallel")
        ),
    )(v[0], v[1], v[2], w_taps)

    # Tiny (C_out,)-sized BN statistics combine + scale/shift folding (glue).
    cnt = jnp.float32(N * HW)
    mean = jnp.sum(stats[:, :, 0], axis=0) / cnt
    ex2 = jnp.sum(stats[:, :, 1], axis=0) / cnt
    var = ex2 - mean * mean                  # biased variance == BN training mode
    scale = gamma * lax.rsqrt(var + eps)
    shift = beta - mean * scale

    # --- Pallas kernel 2: normalize + ReLU (lane-dense: lane dim = H*W) ---
    y_act = pl.pallas_call(
        bn_relu_kernel,
        out_shape=jax.ShapeDtypeStruct((N, C_out, HW), jnp.float32),
        grid_spec=pltpu.PrefetchScalarGridSpec(
            num_scalar_prefetch=0,
            grid=(N, n_cb),
            in_specs=[
                pl.BlockSpec((1, c_blk, HW), lambda n, j: (n, j, 0)),
                pl.BlockSpec((c_blk, 1), lambda n, j: (j, 0)),
                pl.BlockSpec((c_blk, 1), lambda n, j: (j, 0)),
            ],
            out_specs=pl.BlockSpec((1, c_blk, HW), lambda n, j: (n, j, 0)),
        ),
        compiler_params=pltpu.CompilerParams(
            dimension_semantics=("parallel", "parallel")
        ),
    )(y_flat, scale.reshape(C_out, 1), shift.reshape(C_out, 1))

    # (N, C_out, H*W) is already NCHW-contiguous -> free reshape, no transpose.
    return y_act.reshape(N, C_out, H, W)


# ------------------------------------------------------------------
# Pure-JAX reference (keeps the conv bias, proving its cancellation by BN)
# ------------------------------------------------------------------
def conv_unit_reference(x, params, *, padding=1, eps=1e-5):
    w, b, gamma, beta = (
        params["conv_w"],
        params["conv_b"],
        params["bn_gamma"],
        params["bn_beta"],
    )
    xp = jnp.pad(
        x, ((0, 0), (0, 0), (padding, padding), (padding, padding)), mode="reflect"
    )
    conv = lax.conv_general_dilated(
        xp, w, window_strides=(1, 1), padding="VALID",
        dimension_numbers=("NCHW", "OIHW", "NCHW"),
    ) + b[None, :, None, None]
    mean = jnp.mean(conv, axis=(0, 2, 3), keepdims=True)
    var = jnp.mean(jnp.square(conv - mean), axis=(0, 2, 3), keepdims=True)
    bn = (conv - mean) / jnp.sqrt(var + eps) * gamma[None, :, None, None] + beta[
        None, :, None, None
    ]
    return jnp.maximum(bn, 0.0)


# ------------------------------------------------------------------
if __name__ == "__main__":
    # ConvUnit(innd=3, outnd=64, ksz=3, stride=1, dilation=1, padding=1)
    innd, outnd, ksz, padding = 3, 64, 3, 1
    N, H, W = 2, 16, 16

    key = jax.random.PRNGKey(0)
    kx, kwt, kb = jax.random.split(key, 3)

    x = jax.random.normal(kx, (N, innd, H, W), dtype=jnp.float32)

    fan_in = innd * ksz * ksz
    params = {
        "conv_w": jax.random.normal(kwt, (outnd, innd, ksz, ksz), dtype=jnp.float32)
        * (1.0 / jnp.sqrt(fan_in)),
        "conv_b": jax.random.normal(kb, (outnd,), dtype=jnp.float32) * 0.1,
        "bn_gamma": jnp.ones((outnd,), dtype=jnp.float32),   # PyTorch BN defaults
        "bn_beta": jnp.zeros((outnd,), dtype=jnp.float32),
    }

    fwd = jax.jit(functools.partial(conv_unit_forward, ksz=ksz, padding=padding))
    y = fwd(x, params)
    jax.block_until_ready(y)

    y_ref = conv_unit_reference(x, params, padding=padding)
    assert y.shape == (N, outnd, H, W)
    assert jnp.allclose(y, y_ref, rtol=1e-4, atol=1e-4)

    print("KERNEL_OK")
</pallas_src>

<mosaic_0001>
module attributes {stable_mosaic.version = 11 : i64} {
  func.func @bn_relu_kernel(%arg0: i32, %arg1: i32, %arg2: memref<1x32x256xf32, #tpu.memory_space<vmem>>, %arg3: memref<32x1xf32, #tpu.memory_space<vmem>>, %arg4: memref<32x1xf32, #tpu.memory_space<vmem>>, %arg5: memref<1x32x256xf32, #tpu.memory_space<vmem>>) attributes {dimension_semantics = [#tpu.dimension_semantics<parallel>, #tpu.dimension_semantics<parallel>], iteration_bounds = array<i64: 2, 2>, scalar_prefetch = 0 : i64, scratch_operands = 0 : i64, tpu.core_type = #tpu.core_type<tc>, window_params = [{transform_indices = @transform_0, window_bounds = array<i64: 1, 32, 256>}, {transform_indices = @transform_1, window_bounds = array<i64: 32, 1>}, {transform_indices = @transform_2, window_bounds = array<i64: 32, 1>}, {transform_indices = @transform_3, window_bounds = array<i64: 1, 32, 256>}]} {
    %c0 = arith.constant 0 : index
    %c0_0 = arith.constant 0 : index
    %c0_1 = arith.constant 0 : index
    %0 = vector.load %arg2[%c0, %c0_0, %c0_1] : memref<1x32x256xf32, #tpu.memory_space<vmem>>, vector<1x32x256xf32>
    %1 = vector.shape_cast %0 : vector<1x32x256xf32> to vector<32x256xf32>
    %c0_2 = arith.constant 0 : index
    %c0_3 = arith.constant 0 : index
    %2 = vector.load %arg3[%c0_2, %c0_3] : memref<32x1xf32, #tpu.memory_space<vmem>>, vector<32x1xf32>
    %3 = vector.broadcast %2 : vector<32x1xf32> to vector<32x256xf32>
    %4 = arith.mulf %1, %3 : vector<32x256xf32>
    %c0_4 = arith.constant 0 : index
    %c0_5 = arith.constant 0 : index
    %5 = vector.load %arg4[%c0_4, %c0_5] : memref<32x1xf32, #tpu.memory_space<vmem>>, vector<32x1xf32>
    %6 = vector.broadcast %5 : vector<32x1xf32> to vector<32x256xf32>
    %7 = arith.addf %4, %6 : vector<32x256xf32>
    %cst = arith.constant 0.000000e+00 : f32
    %8 = vector.broadcast %cst : f32 to vector<32x256xf32>
    %9 = arith.maximumf %7, %8 : vector<32x256xf32>
    %c0_6 = arith.constant 0 : index
    %c0_7 = arith.constant 0 : index
    %c0_8 = arith.constant 0 : index
    %10 = vector.load %arg5[%c0_6, %c0_7, %c0_8] : memref<1x32x256xf32, #tpu.memory_space<vmem>>, vector<1x32x256xf32>
    %11 = vector.shape_cast %10 : vector<1x32x256xf32> to vector<32x256xf32>
    %12 = vector.shape_cast %9 : vector<32x256xf32> to vector<1x32x256xf32>
    tpu.vector_store %arg5[%c0_6, %c0_7, %c0_8], %12 {strides = array<i32>} : memref<1x32x256xf32, #tpu.memory_space<vmem>>, vector<1x32x256xf32>,
    return
  }
  func.func @transform_0(%arg0: i32, %arg1: i32) -> (i32, i32, i32) {
    %c0_i32 = arith.constant 0 : i32
    %c0_i32_0 = arith.constant 0 : i32
    return %arg0, %arg1, %c0_i32 : i32, i32, i32
  }
  func.func @transform_1(%arg0: i32, %arg1: i32) -> (i32, i32) {
    %c0_i32 = arith.constant 0 : i32
    %c0_i32_0 = arith.constant 0 : i32
    return %arg1, %c0_i32 : i32, i32
  }
  func.func @transform_2(%arg0: i32, %arg1: i32) -> (i32, i32) {
    %c0_i32 = arith.constant 0 : i32
    %c0_i32_0 = arith.constant 0 : i32
    return %arg1, %c0_i32 : i32, i32
  }
  func.func @transform_3(%arg0: i32, %arg1: i32) -> (i32, i32, i32) {
    %c0_i32 = arith.constant 0 : i32
    %c0_i32_0 = arith.constant 0 : i32
    return %arg0, %arg1, %c0_i32 : i32, i32, i32
  }
}

module attributes {stable_mosaic.version = 11 : i64} {
  func.func @conv_bnstats_kernel(%arg0: i32, %arg1: i32, %arg2: memref<1x3x288xf32, #tpu.memory_space<vmem>>, %arg3: memref<1x3x288xf32, #tpu.memory_space<vmem>>, %arg4: memref<1x3x288xf32, #tpu.memory_space<vmem>>, %arg5: memref<9x32x3xf32, #tpu.memory_space<vmem>>, %arg6: memref<1x32x256xf32, #tpu.memory_space<vmem>>, %arg7: memref<1x32x2xf32, #tpu.memory_space<vmem>>) attributes {dimension_semantics = [#tpu.dimension_semantics<parallel>, #tpu.dimension_semantics<parallel>], iteration_bounds = array<i64: 2, 2>, scalar_prefetch = 0 : i64, scratch_operands = 0 : i64, tpu.core_type = #tpu.core_type<tc>, window_params = [{transform_indices = @transform_0, window_bounds = array<i64: 1, 3, 288>}, {transform_indices = @transform_1, window_bounds = array<i64: 1, 3, 288>}, {transform_indices = @transform_2, window_bounds = array<i64: 1, 3, 288>}, {transform_indices = @transform_3, window_bounds = array<i64: 9, 32, 3>}, {transform_indices = @transform_4, window_bounds = array<i64: 1, 32, 256>}, {transform_indices = @transform_5, window_bounds = array<i64: 1, 32, 2>}]} {
    %cst = arith.constant 0.000000e+00 : f32
    %0 = vector.broadcast %cst : f32 to vector<32x256xf32>
    %c0 = arith.constant 0 : index
    %c0_0 = arith.constant 0 : index
    %c0_1 = arith.constant 0 : index
    %1 = vector.load %arg2[%c0, %c0_0, %c0_1] : memref<1x3x288xf32, #tpu.memory_space<vmem>>, vector<1x3x256xf32>
    %2 = vector.shape_cast %1 : vector<1x3x256xf32> to vector<3x256xf32>
    %c0_2 = arith.constant 0 : index
    %c0_3 = arith.constant 0 : index
    %c0_4 = arith.constant 0 : index
    %3 = vector.load %arg5[%c0_2, %c0_3, %c0_4] : memref<9x32x3xf32, #tpu.memory_space<vmem>>, vector<1x32x3xf32>
    %4 = vector.shape_cast %3 : vector<1x32x3xf32> to vector<32x3xf32>
    %cst_5 = arith.constant dense<0.000000e+00> : vector<32x256xf32>
    %5 = tpu.matmul %4, %2, %cst_5 {dimension_numbers = #tpu.dot_dimension_numbers<[1], [0], [0], [1], [0, 0, 1, 1], [], []>} : vector<32x3xf32>, vector<3x256xf32>, vector<32x256xf32> -> vector<32x256xf32>
    %6 = arith.addf %0, %5 : vector<32x256xf32>
    %c0_6 = arith.constant 0 : index
    %c0_7 = arith.constant 0 : index
    %c16 = arith.constant 16 : index
    %7 = vector.load %arg2[%c0_6, %c0_7, %c16] : memref<1x3x288xf32, #tpu.memory_space<vmem>>, vector<1x3x256xf32>
    %8 = vector.shape_cast %7 : vector<1x3x256xf32> to vector<3x256xf32>
    %c3 = arith.constant 3 : index
    %c0_8 = arith.constant 0 : index
    %c0_9 = arith.constant 0 : index
    %9 = vector.load %arg5[%c3, %c0_8, %c0_9] : memref<9x32x3xf32, #tpu.memory_space<vmem>>, vector<1x32x3xf32>
    %10 = vector.shape_cast %9 : vector<1x32x3xf32> to vector<32x3xf32>
    %cst_10 = arith.constant dense<0.000000e+00> : vector<32x256xf32>
    %11 = tpu.matmul %10, %8, %cst_10 {dimension_numbers = #tpu.dot_dimension_numbers<[1], [0], [0], [1], [0, 0, 1, 1], [], []>} : vector<32x3xf32>, vector<3x256xf32>, vector<32x256xf32> -> vector<32x256xf32>
    %12 = arith.addf %6, %11 : vector<32x256xf32>
    %c0_11 = arith.constant 0 : index
    %c0_12 = arith.constant 0 : index
    %c32 = arith.constant 32 : index
    %13 = vector.load %arg2[%c0_11, %c0_12, %c32] : memref<1x3x288xf32, #tpu.memory_space<vmem>>, vector<1x3x256xf32>
    %14 = vector.shape_cast %13 : vector<1x3x256xf32> to vector<3x256xf32>
    %c6 = arith.constant 6 : index
    %c0_13 = arith.constant 0 : index
    %c0_14 = arith.constant 0 : index
    %15 = vector.load %arg5[%c6, %c0_13, %c0_14] : memref<9x32x3xf32, #tpu.memory_space<vmem>>, vector<1x32x3xf32>
    %16 = vector.shape_cast %15 : vector<1x32x3xf32> to vector<32x3xf32>
    %cst_15 = arith.constant dense<0.000000e+00> : vector<32x256xf32>
    %17 = tpu.matmul %16, %14, %cst_15 {dimension_numbers = #tpu.dot_dimension_numbers<[1], [0], [0], [1], [0, 0, 1, 1], [], []>} : vector<32x3xf32>, vector<3x256xf32>, vector<32x256xf32> -> vector<32x256xf32>
    %18 = arith.addf %12, %17 : vector<32x256xf32>
    %c0_16 = arith.constant 0 : index
    %c0_17 = arith.constant 0 : index
    %c0_18 = arith.constant 0 : index
    %19 = vector.load %arg3[%c0_16, %c0_17, %c0_18] : memref<1x3x288xf32, #tpu.memory_space<vmem>>, vector<1x3x256xf32>
    %20 = vector.shape_cast %19 : vector<1x3x256xf32> to vector<3x256xf32>
    %c1 = arith.constant 1 : index
    %c0_19 = arith.constant 0 : index
    %c0_20 = arith.constant 0 : index
    %21 = vector.load %arg5[%c1, %c0_19, %c0_20] : memref<9x32x3xf32, #tpu.memory_space<vmem>>, vector<1x32x3xf32>
    %22 = vector.shape_cast %21 : vector<1x32x3xf32> to vector<32x3xf32>
    %cst_21 = arith.constant dense<0.000000e+00> : vector<32x256xf32>
    %23 = tpu.matmul %22, %20, %cst_21 {dimension_numbers = #tpu.dot_dimension_numbers<[1], [0], [0], [1], [0, 0, 1, 1], [], []>} : vector<32x3xf32>, vector<3x256xf32>, vector<32x256xf32> -> vector<32x256xf32>
    %24 = arith.addf %18, %23 : vector<32x256xf32>
    %c0_22 = arith.constant 0 : index
    %c0_23 = arith.constant 0 : index
    %c16_24 = arith.constant 16 : index
    %25 = vector.load %arg3[%c0_22, %c0_23, %c16_24] : memref<1x3x288xf32, #tpu.memory_space<vmem>>, vector<1x3x256xf32>
    %26 = vector.shape_cast %25 : vector<1x3x256xf32> to vector<3x256xf32>
    %c4 = arith.constant 4 : index
    %c0_25 = arith.constant 0 : index
    %c0_26 = arith.constant 0 : index
    %27 = vector.load %arg5[%c4, %c0_25, %c0_26] : memref<9x32x3xf32, #tpu.memory_space<vmem>>, vector<1x32x3xf32>
    %28 = vector.shape_cast %27 : vector<1x32x3xf32> to vector<32x3xf32>
    %cst_27 = arith.constant dense<0.000000e+00> : vector<32x256xf32>
    %29 = tpu.matmul %28, %26, %cst_27 {dimension_numbers = #tpu.dot_dimension_numbers<[1], [0], [0], [1], [0, 0, 1, 1], [], []>} : vector<32x3xf32>, vector<3x256xf32>, vector<32x256xf32> -> vector<32x256xf32>
    %30 = arith.addf %24, %29 : vector<32x256xf32>
    %c0_28 = arith.constant 0 : index
    %c0_29 = arith.constant 0 : index
    %c32_30 = arith.constant 32 : index
    %31 = vector.load %arg3[%c0_28, %c0_29, %c32_30] : memref<1x3x288xf32, #tpu.memory_space<vmem>>, vector<1x3x256xf32>
    %32 = vector.shape_cast %31 : vector<1x3x256xf32> to vector<3x256xf32>
    %c7 = arith.constant 7 : index
    %c0_31 = arith.constant 0 : index
    %c0_32 = arith.constant 0 : index
    %33 = vector.load %arg5[%c7, %c0_31, %c0_32] : memref<9x32x3xf32, #tpu.memory_space<vmem>>, vector<1x32x3xf32>
    %34 = vector.shape_cast %33 : vector<1x32x3xf32> to vector<32x3xf32>
    %cst_33 = arith.constant dense<0.000000e+00> : vector<32x256xf32>
    %35 = tpu.matmul %34, %32, %cst_33 {dimension_numbers = #tpu.dot_dimension_numbers<[1], [0], [0], [1], [0, 0, 1, 1], [], []>} : vector<32x3xf32>, vector<3x256xf32>, vector<32x256xf32> -> vector<32x256xf32>
    %36 = arith.addf %30, %35 : vector<32x256xf32>
    %c0_34 = arith.constant 0 : index
    %c0_35 = arith.constant 0 : index
    %c0_36 = arith.constant 0 : index
    %37 = vector.load %arg4[%c0_34, %c0_35, %c0_36] : memref<1x3x288xf32, #tpu.memory_space<vmem>>, vector<1x3x256xf32>
    %38 = vector.shape_cast %37 : vector<1x3x256xf32> to vector<3x256xf32>
    %c2 = arith.constant 2 : index
    %c0_37 = arith.constant 0 : index
    %c0_38 = arith.constant 0 : index
    %39 = vector.load %arg5[%c2, %c0_37, %c0_38] : memref<9x32x3xf32, #tpu.memory_space<vmem>>, vector<1x32x3xf32>
    %40 = vector.shape_cast %39 : vector<1x32x3xf32> to vector<32x3xf32>
    %cst_39 = arith.constant dense<0.000000e+00> : vector<32x256xf32>
    %41 = tpu.matmul %40, %38, %cst_39 {dimension_numbers = #tpu.dot_dimension_numbers<[1], [0], [0], [1], [0, 0, 1, 1], [], []>} : vector<32x3xf32>, vector<3x256xf32>, vector<32x256xf32> -> vector<32x256xf32>
    %42 = arith.addf %36, %41 : vector<32x256xf32>
    %c0_40 = arith.constant 0 : index
    %c0_41 = arith.constant 0 : index
    %c16_42 = arith.constant 16 : index
    %43 = vector.load %arg4[%c0_40, %c0_41, %c16_42] : memref<1x3x288xf32, #tpu.memory_space<vmem>>, vector<1x3x256xf32>
    %44 = vector.shape_cast %43 : vector<1x3x256xf32> to vector<3x256xf32>
    %c5 = arith.constant 5 : index
    %c0_43 = arith.constant 0 : index
    %c0_44 = arith.constant 0 : index
    %45 = vector.load %arg5[%c5, %c0_43, %c0_44] : memref<9x32x3xf32, #tpu.memory_space<vmem>>, vector<1x32x3xf32>
    %46 = vector.shape_cast %45 : vector<1x32x3xf32> to vector<32x3xf32>
    %cst_45 = arith.constant dense<0.000000e+00> : vector<32x256xf32>
    %47 = tpu.matmul %46, %44, %cst_45 {dimension_numbers = #tpu.dot_dimension_numbers<[1], [0], [0], [1], [0, 0, 1, 1], [], []>} : vector<32x3xf32>, vector<3x256xf32>, vector<32x256xf32> -> vector<32x256xf32>
    %48 = arith.addf %42, %47 : vector<32x256xf32>
    %c0_46 = arith.constant 0 : index
    %c0_47 = arith.constant 0 : index
    %c32_48 = arith.constant 32 : index
    %49 = vector.load %arg4[%c0_46, %c0_47, %c32_48] : memref<1x3x288xf32, #tpu.memory_space<vmem>>, vector<1x3x256xf32>
    %50 = vector.shape_cast %49 : vector<1x3x256xf32> to vector<3x256xf32>
    %c8 = arith.constant 8 : index
    %c0_49 = arith.constant 0 : index
    %c0_50 = arith.constant 0 : index
    %51 = vector.load %arg5[%c8, %c0_49, %c0_50] : memref<9x32x3xf32, #tpu.memory_space<vmem>>, vector<1x32x3xf32>
    %52 = vector.shape_cast %51 : vector<1x32x3xf32> to vector<32x3xf32>
    %cst_51 = arith.constant dense<0.000000e+00> : vector<32x256xf32>
    %53 = tpu.matmul %52, %50, %cst_51 {dimension_numbers = #tpu.dot_dimension_numbers<[1], [0], [0], [1], [0, 0, 1, 1], [], []>} : vector<32x3xf32>, vector<3x256xf32>, vector<32x256xf32> -> vector<32x256xf32>
    %54 = arith.addf %48, %53 : vector<32x256xf32>
    %c0_52 = arith.constant 0 : index
    %c0_53 = arith.constant 0 : index
    %c0_54 = arith.constant 0 : index
    %55 = vector.load %arg6[%c0_52, %c0_53, %c0_54] : memref<1x32x256xf32, #tpu.memory_space<vmem>>, vector<1x32x256xf32>
    %56 = vector.shape_cast %55 : vector<1x32x256xf32> to vector<32x256xf32>
    %57 = vector.shape_cast %54 : vector<32x256xf32> to vector<1x32x256xf32>
    tpu.vector_store %arg6[%c0_52, %c0_53, %c0_54], %57 {strides = array<i32>} : memref<1x32x256xf32, #tpu.memory_space<vmem>>, vector<1x32x256xf32>,
    %cst_55 = arith.constant dense<0.000000e+00> : vector<32xf32>
    %58 = vector.multi_reduction <add>, %54, %cst_55 [1] : vector<32x256xf32> to vector<32xf32>
    %59 = vector.shape_cast %58 : vector<32xf32> to vector<32x1xf32>
    %c0_56 = arith.constant 0 : index
    %c0_57 = arith.constant 0 : index
    %c0_58 = arith.constant 0 : index
    %60 = vector.load %arg7[%c0_56, %c0_57, %c0_58] : memref<1x32x2xf32, #tpu.memory_space<vmem>>, vector<1x32x1xf32>
    %61 = vector.shape_cast %60 : vector<1x32x1xf32> to vector<32x1xf32>
    %62 = vector.shape_cast %59 : vector<32x1xf32> to vector<1x32x1xf32>
    tpu.vector_store %arg7[%c0_56, %c0_57, %c0_58], %62 {strides = array<i32>} : memref<1x32x2xf32, #tpu.memory_space<vmem>>, vector<1x32x1xf32>,
    %63 = arith.mulf %54, %54 : vector<32x256xf32>
    %cst_59 = arith.constant dense<0.000000e+00> : vector<32xf32>
    %64 = vector.multi_reduction <add>, %63, %cst_59 [1] : vector<32x256xf32> to vector<32xf32>
    %65 = vector.shape_cast %64 : vector<32xf32> to vector<32x1xf32>
    %c0_60 = arith.constant 0 : index
    %c0_61 = arith.constant 0 : index
    %c1_62 = arith.constant 1 : index
    %66 = vector.load %arg7[%c0_60, %c0_61, %c1_62] : memref<1x32x2xf32, #tpu.memory_space<vmem>>, vector<1x32x1xf32>
    %67 = vector.shape_cast %66 : vector<1x32x1xf32> to vector<32x1xf32>
    %68 = vector.shape_cast %65 : vector<32x1xf32> to vector<1x32x1xf32>
    tpu.vector_store %arg7[%c0_60, %c0_61, %c1_62], %68 {strides = array<i32>} : memref<1x32x2xf32, #tpu.memory_space<vmem>>, vector<1x32x1xf32>,
    return
  }
  func.func @transform_0(%arg0: i32, %arg1: i32) -> (i32, i32, i32) {
    %c0_i32 = arith.constant 0 : i32
    %c0_i32_0 = arith.constant 0 : i32
    %c0_i32_1 = arith.constant 0 : i32
    return %arg0, %c0_i32, %c0_i32_0 : i32, i32, i32
  }
  func.func @transform_1(%arg0: i32, %arg1: i32) -> (i32, i32, i32) {
    %c0_i32 = arith.constant 0 : i32
    %c0_i32_0 = arith.constant 0 : i32
    %c0_i32_1 = arith.constant 0 : i32
    return %arg0, %c0_i32, %c0_i32_0 : i32, i32, i32
  }
  func.func @transform_2(%arg0: i32, %arg1: i32) -> (i32, i32, i32) {
    %c0_i32 = arith.constant 0 : i32
    %c0_i32_0 = arith.constant 0 : i32
    %c0_i32_1 = arith.constant 0 : i32
    return %arg0, %c0_i32, %c0_i32_0 : i32, i32, i32
  }
  func.func @transform_3(%arg0: i32, %arg1: i32) -> (i32, i32, i32) {
    %c0_i32 = arith.constant 0 : i32
    %c0_i32_0 = arith.constant 0 : i32
    %c0_i32_1 = arith.constant 0 : i32
    return %c0_i32, %arg1, %c0_i32_0 : i32, i32, i32
  }
  func.func @transform_4(%arg0: i32, %arg1: i32) -> (i32, i32, i32) {
    %c0_i32 = arith.constant 0 : i32
    %c0_i32_0 = arith.constant 0 : i32
    return %arg0, %arg1, %c0_i32 : i32, i32, i32
  }
  func.func @transform_5(%arg0: i32, %arg1: i32) -> (i32, i32, i32) {
    %c0_i32 = arith.constant 0 : i32
    %c0_i32_0 = arith.constant 0 : i32
    return %arg0, %arg1, %c0_i32 : i32, i32, i32
  }
}

</mosaic_0001>

<llo_original>
// kernel: conv_unit_forward.3
$region0: #{conv_unit_forward.3}
  #allocation0 [shape = 'u32[]', space=smem, size = 0x4, offset = 0x4, fixed_abs, tag = 'smem constant byte address 0x4 - core index']
  #allocation1 [shape = 'u32[72,128]{1,0:T(1,128)}', space=vmem, size = 0x9000, scoped, tag = 'internal scratch']
  %s0 = inlined_call_operand.vmem [shape: f32[2,64,256], index: 0, kind: input, shape index: {}]
  %s1 = inlined_call_operand.vmem [shape: f32[64,1], index: 1, kind: input, shape index: {}]
  %s2 = inlined_call_operand.vmem [shape: f32[64,1], index: 2, kind: input, shape index: {}]
  %s3 = inlined_call_operand.vmem [shape: f32[2,64,256], index: 3, kind: output, shape index: {}]
  %s4 = sld [smem:[#allocation0]]
  $region45: #{conv_unit_forward.3} parent=0
    _
  %s6 = ssub.s32 1, %s4
  %s7 = scalar_select 0, %s6, %s4
  loop: start=0, step=1, limit=6
  $region2: #{conv_unit_forward.3} parent=0 // loop_pre_header
    _
  $region3: #{conv_unit_forward.3} parent=0 // loop_header
    %s9 = sphi 0, %s13
    %p10 = scmp.ge.s32.totalorder %s9, 6
    %s16 = sphi 0, %s28
    %s17 = sphi 0, %s24
    %s18 = sphi 0, %s16
    %s19 = sphi 0, %s17
    %s20 = sphi 0, %s18
    %s21 = sphi 0, %s19
    %s33 = sphi 0, %s35
    %s36 = sphi 0, %s33
    %s37 = sphi 0, %s36
    %s53 = sphi 0, %s37
    %s59 = sphi 0, %s61
    %s62 = sphi 0, %s59
    %s63 = sphi 0, %s62
    %s79 = sphi 0, %s63
    %s85 = sphi 0, %s87
    %s88 = sphi 0, %s85
    %s89 = sphi 0, %s88
    %s105 = sphi 0, %s89
    %s113 = sphi 0, %s115
    %s116 = sphi 0, %s113
    %s117 = sphi 0, %s116
    %s133 = sphi 0, %s117
  $region4: #{conv_unit_forward.3} parent=0 // loop_header_branch
    %12 = sbr.rel (%p10) target = $region8
  $region5: #{conv_unit_forward.3} parent=0 // loop_body
    %s14 = ssub.s32 %s9, 1
    %s15 = ssub.s32 %s9, 2
    %s22 = sadd.s32 1, %s17
    %p23 = scmp.ge.s32.totalorder %s22, 2
    %s24 = scalar_select %p23, 0, %s22
    %s25 = sadd.s32 1, %s16
    %s26 = scalar_select %p23, %s25, %s16
    %p27 = scmp.ge.s32.totalorder %s26, 2
    %s28 = scalar_select %p27, 0, %s26
    %s29 = ssub.s32 %s16, %s28
    %s30 = ssub.s32 %s17, %s24
    %s31 = sor.u32 %s29, %s30
    %p32 = scmp.eq.s32.totalorder %s31, 0
    %s34 = sadd.s32 %s33, 1
    %s35 = scalar_select %p32, %s33, %s34
    %p38 = pneg %p32
    %p39 = scmp.eq.s32.totalorder %s9, 3
    %p40 = por %p38, %p39
    %p41 = scmp.ne.s32.totalorder %s33, %s36
    %p42 = scmp.eq.s32.totalorder %s9, 0
    %p43 = por %p41, %p42
    %p44 = scmp.ne.s32.totalorder %s33, %s36
    %p45 = scmp.eq.s32.totalorder %s14, 3
    %p46 = por %p44, %p45
    %p47 = scmp.ne.s32.totalorder %s36, %s37
    %p48 = scmp.eq.s32.totalorder %s14, 0
    %p49 = por %p47, %p48
    %p50 = scmp.ne.s32.totalorder %s36, %s37
    %p51 = scmp.eq.s32.totalorder %s15, 3
    %p52 = por %p50, %p51
    %p54 = scmp.ne.s32.totalorder %s37, %s53
    %p55 = scmp.eq.s32.totalorder %s15, 0
    %p56 = por %p54, %p55
    %s57 = ssub.s32 %s17, %s24
    %p58 = scmp.eq.s32.totalorder %s57, 0
    %s60 = sadd.s32 %s59, 1
    %s61 = scalar_select %p58, %s59, %s60
    %p64 = pneg %p58
    %p65 = scmp.eq.s32.totalorder %s9, 3
    %p66 = por %p64, %p65
    %p67 = scmp.ne.s32.totalorder %s59, %s62
    %p68 = scmp.eq.s32.totalorder %s9, 0
    %p69 = por %p67, %p68
    %p70 = scmp.ne.s32.totalorder %s59, %s62
    %p71 = scmp.eq.s32.totalorder %s14, 3
    %p72 = por %p70, %p71
    %p73 = scmp.ne.s32.totalorder %s62, %s63
    %p74 = scmp.eq.s32.totalorder %s14, 0
    %p75 = por %p73, %p74
    %p76 = scmp.ne.s32.totalorder %s62, %s63
    %p77 = scmp.eq.s32.totalorder %s15, 3
    %p78 = por %p76, %p77
    %p80 = scmp.ne.s32.totalorder %s63, %s79
    %p81 = scmp.eq.s32.totalorder %s15, 0
    %p82 = por %p80, %p81
    %s83 = ssub.s32 %s17, %s24
    %p84 = scmp.eq.s32.totalorder %s83, 0
    %s86 = sadd.s32 %s85, 1
    %s87 = scalar_select %p84, %s85, %s86
    %p90 = pneg %p84
    %p91 = scmp.eq.s32.totalorder %s9, 3
    %p92 = por %p90, %p91
    %p93 = scmp.ne.s32.totalorder %s85, %s88
    %p94 = scmp.eq.s32.totalorder %s9, 0
    %p95 = por %p93, %p94
    %p96 = scmp.ne.s32.totalorder %s85, %s88
    %p97 = scmp.eq.s32.totalorder %s14, 3
    %p98 = por %p96, %p97
    %p99 = scmp.ne.s32.totalorder %s88, %s89
    %p100 = scmp.eq.s32.totalorder %s14, 0
    %p101 = por %p99, %p100
    %p102 = scmp.ne.s32.totalorder %s88, %s89
    %p103 = scmp.eq.s32.totalorder %s15, 3
    %p104 = por %p102, %p103
    %p106 = scmp.ne.s32.totalorder %s89, %s105
    %p107 = scmp.eq.s32.totalorder %s15, 0
    %p108 = por %p106, %p107
    %s109 = ssub.s32 %s16, %s28
    %s110 = ssub.s32 %s17, %s24
    %s111 = sor.u32 %s109, %s110
    %p112 = scmp.eq.s32.totalorder %s111, 0
    %s114 = sadd.s32 %s113, 1
    %s115 = scalar_select %p112, %s113, %s114
    %p118 = pneg %p112
    %p119 = scmp.eq.s32.totalorder %s9, 3
    %p120 = por %p118, %p119
    %p121 = scmp.ne.s32.totalorder %s113, %s116
    %p122 = scmp.eq.s32.totalorder %s9, 0
    %p123 = por %p121, %p122
    %p124 = scmp.ne.s32.totalorder %s113, %s116
    %p125 = scmp.eq.s32.totalorder %s14, 3
    %p126 = por %p124, %p125
    %p127 = scmp.ne.s32.totalorder %s116, %s117
    %p128 = scmp.eq.s32.totalorder %s14, 0
    %p129 = por %p127, %p128
    %p130 = scmp.ne.s32.totalorder %s116, %s117
    %p131 = scmp.eq.s32.totalorder %s15, 3
    %p132 = por %p130, %p131
    %p134 = scmp.ne.s32.totalorder %s117, %s133
    %p135 = scmp.eq.s32.totalorder %s15, 0
    %p136 = por %p134, %p135
    %p137 = scmp.le.s32.totalorder 1, %s9
    %p138 = scmp.lt.s32.totalorder %s9, 5
    %p139 = pnand %p137, %p138
    %p140 = pneg %p139
    // Predicated region
    $region9: #{conv_unit_forward.3} parent=5 // pred_check
      _
    $region10: #{conv_unit_forward.3} parent=5 // pred_check_branch
      %142 = sbr.rel (%p139) target = $region12
    $region11: #{conv_unit_forward.3} parent=5 // pred_region
      %s143 = ssub.s32 %s9, 1
    $region12: #{conv_unit_forward.3} parent=5 // pred_fallthru
      _
    %p144 = scmp.lt.s32.totalorder %s9, 4
    // Predicated region
    $region13: #{conv_unit_forward.3} parent=5 // pred_check
      %p145 = pneg %p144
    $region14: #{conv_unit_forward.3} parent=5 // pred_check_branch
      %147 = sbr.rel (%p145) target = $region16
    $region15: #{conv_unit_forward.3} parent=5 // pred_region
      // Predicated region
      $region17: #{conv_unit_forward.3} parent=15 // pred_check
        %p148 = pneg %p43
      $region18: #{conv_unit_forward.3} parent=15 // pred_check_branch
        %150 = sbr.rel (%p148) target = $region20
      $region19: #{conv_unit_forward.3} parent=15 // pred_region
        %s151 = smul.u32 4, %s17
        %p152 = scmp.lt.s32.totalorder %s16, 1
        %s153 = scalar_select %p152, %s16, 1
        %p154 = scmp.lt.s32.totalorder %s151, 7
        %s155 = scalar_select %p154, %s151, 7
        %s156 = smul.addr %s155, 2
        %s157 = smul.addr %s153, 16
        %s158 = sadd.s32 %s156, %s157
        %s159 = smul.addr %s158, 8
        %s160 = scalar_lea.vmem %s0, %s159
        %s161 = smul.u32 4, %s17
      $region20: #{conv_unit_forward.3} parent=15 // pred_fallthru
        _
      // Predicated region
      $region21: #{conv_unit_forward.3} parent=15 // pred_check
        %p162 = pneg %p69
      $region22: #{conv_unit_forward.3} parent=15 // pred_check_branch
        %164 = sbr.rel (%p162) target = $region24
      $region23: #{conv_unit_forward.3} parent=15 // pred_region
        %s165 = smul.u32 4, %s17
        %p166 = scmp.lt.s32.totalorder %s165, 7
        %s167 = scalar_select %p166, %s165, 7
        %s168 = smul.addr %s167, 8
        %s169 = scalar_lea.vmem %s1, %s168
        %s170 = smul.u32 4, %s17
      $region24: #{conv_unit_forward.3} parent=15 // pred_fallthru
        _
      // Predicated region
      $region25: #{conv_unit_forward.3} parent=15 // pred_check
        %p171 = pneg %p95
      $region26: #{conv_unit_forward.3} parent=15 // pred_check_branch
        %173 = sbr.rel (%p171) target = $region28
      $region27: #{conv_unit_forward.3} parent=15 // pred_region
        %s174 = smul.u32 4, %s17
        %p175 = scmp.lt.s32.totalorder %s174, 7
        %s176 = scalar_select %p175, %s174, 7
        %s177 = smul.addr %s176, 8
        %s178 = scalar_lea.vmem %s2, %s177
        %s179 = smul.u32 4, %s17
      $region28: #{conv_unit_forward.3} parent=15 // pred_fallthru
        _
    $region16: #{conv_unit_forward.3} parent=5 // pred_fallthru
      _
    %p180 = scmp.le.s32.totalorder 1, %s9
    %p181 = scmp.lt.s32.totalorder %s9, 5
    %p182 = pnand %p180, %p181
    %p183 = pneg %p182
    // Predicated region
    $region29: #{conv_unit_forward.3} parent=5 // pred_check
      _
    $region30: #{conv_unit_forward.3} parent=5 // pred_check_branch
      %185 = sbr.rel (%p182) target = $region32
    $region31: #{conv_unit_forward.3} parent=5 // pred_region
      %s186 = ssub.s32 %s9, 1
      %s187 = smul.u32 4, %s19
      %p188 = scmp.lt.s32.totalorder %s18, 1
      %s189 = scalar_select %p188, %s18, 1
      %p190 = scmp.lt.s32.totalorder %s187, 7
      %s191 = scalar_select %p190, %s187, 7
      %s192 = smul.addr %s191, 2
      %s193 = smul.addr %s189, 16
      %s194 = sadd.s32 %s192, %s193
      %s195 = smul.addr %s194, 8
      %s196 = scalar_lea.vmem %s0, %s195
      %p197 = pneg %p49
      %p198 = pneg %p46
      %s199 = smul.u32 4, %s19
      %p200 = scmp.lt.s32.totalorder %s199, 7
      %s201 = scalar_select %p200, %s199, 7
      %s202 = smul.addr %s201, 8
      %s203 = scalar_lea.vmem %s1, %s202
      %p204 = pneg %p75
      %p205 = pneg %p72
      %s206 = smul.u32 4, %s19
      %p207 = scmp.lt.s32.totalorder %s206, 7
      %s208 = scalar_select %p207, %s206, 7
      %s209 = smul.addr %s208, 8
      %s210 = scalar_lea.vmem %s2, %s209
      %p211 = pneg %p101
      %p212 = pneg %p98
      %p213 = pneg %p129
      %p214 = pneg %p126
      %s215 = smul.u32 4, %s19
      %p216 = scmp.lt.s32.totalorder %s18, 1
      %s217 = scalar_select %p216, %s18, 1
      %p218 = scmp.lt.s32.totalorder %s215, 7
      %s219 = scalar_select %p218, %s215, 7
      %s220 = smul.addr %s219, 2
      %s221 = smul.addr %s217, 16
      %s222 = sadd.s32 %s220, %s221
      %s223 = smul.addr %s222, 8
      %s224 = scalar_lea.vmem %s3, %s223
      %s225 = smul.u32 4, %s19
      %p226 = scmp.lt.s32.totalorder %s18, 1
      %s227 = scalar_select %p226, %s18, 1
      %p228 = scmp.lt.s32.totalorder %s225, 7
      %s229 = scalar_select %p228, %s225, 7
      %s230 = smul.addr %s229, 2
      %s231 = smul.addr %s227, 16
      %s232 = sadd.s32 %s230, %s231
      %s233 = smul.addr %s232, 8
      %s234 = scalar_lea.vmem %s0, %s233
      %s235 = smul.u32 4, %s19
      %s236 = smul.u32 4, %s19
      %p237 = scmp.lt.s32.totalorder %s236, 7
      %s238 = scalar_select %p237, %s236, 7
      %s239 = smul.addr %s238, 8
      %s240 = scalar_lea.vmem %s1, %s239
      %s241 = smul.u32 4, %s19
      %s242 = smul.u32 4, %s19
      %p243 = scmp.lt.s32.totalorder %s242, 7
      %s244 = scalar_select %p243, %s242, 7
      %s245 = smul.addr %s244, 8
      %s246 = scalar_lea.vmem %s2, %s245
      %s247 = smul.u32 4, %s19
      %s248 = smul.u32 4, %s19
      %p249 = scmp.lt.s32.totalorder %s18, 1
      %s250 = scalar_select %p249, %s18, 1
      %p251 = scmp.lt.s32.totalorder %s248, 7
      %s252 = scalar_select %p251, %s248, 7
      %s253 = smul.addr %s252, 2
      %s254 = smul.addr %s250, 16
      %s255 = sadd.s32 %s253, %s254
      %s256 = smul.addr %s255, 8
      %s257 = scalar_lea.vmem %s3, %s256
      %s258 = smul.u32 4, %s19
      %v259 = vld [vmem:[%s234] sm:$0xff]
      %v260 = vld [vmem:[%s234 + $0x8] sm:$0xff]
      %v261 = vld [vmem:[%s234 + $0x10] sm:$0xff]
      %v262 = vld [vmem:[%s234 + $0x18] sm:$0xff]
      %v263 = vld [vmem:[%s234 + $0x20] sm:$0xff]
      %v264 = vld [vmem:[%s234 + $0x28] sm:$0xff]
      %v265 = vld [vmem:[%s234 + $0x30] sm:$0xff]
      %v266 = vld [vmem:[%s234 + $0x38] sm:$0xff]
      %v267 = vld [vmem:[%s240] sm:$0xff]
      %v268 = vld [vmem:[%s240 + $0x8] sm:$0xff]
      %v269 = vld [vmem:[%s240 + $0x10] sm:$0xff]
      %v270 = vld [vmem:[%s240 + $0x18] sm:$0xff]
      %272 = vset.pattern.permute.xlu0 0
      %273 = vperm.xlu0 %272, %v267
      %v274 = vpop.permute.xlu0 %273
      %277 = vset.pattern.permute.xlu0 0
      %278 = vperm.xlu0 %277, %v268
      %v279 = vpop.permute.xlu0 %278
      %282 = vset.pattern.permute.xlu0 0
      %283 = vperm.xlu0 %282, %v269
      %v284 = vpop.permute.xlu0 %283
      %287 = vset.pattern.permute.xlu0 0
      %288 = vperm.xlu0 %287, %v270
      %v289 = vpop.permute.xlu0 %288
      %v291 = vmul.f32 %v259, %v274
      %v292 = vmul.f32 %v260, %v274
      %v293 = vmul.f32 %v261, %v279
      %v294 = vmul.f32 %v262, %v279
      %v295 = vmul.f32 %v263, %v284
      %v296 = vmul.f32 %v264, %v284
      %v297 = vmul.f32 %v265, %v289
      %v298 = vmul.f32 %v266, %v289
      %v299 = vld [vmem:[%s246] sm:$0xff]
      %v300 = vld [vmem:[%s246 + $0x8] sm:$0xff]
      %v301 = vld [vmem:[%s246 + $0x10] sm:$0xff]
      %v302 = vld [vmem:[%s246 + $0x18] sm:$0xff]
      %304 = vset.pattern.permute.xlu0 0
      %305 = vperm.xlu0 %304, %v299
      %v306 = vpop.permute.xlu0 %305
      %309 = vset.pattern.permute.xlu0 0
      %310 = vperm.xlu0 %309, %v300
      %v311 = vpop.permute.xlu0 %310
      %314 = vset.pattern.permute.xlu0 0
      %315 = vperm.xlu0 %314, %v301
      %v316 = vpop.permute.xlu0 %315
      %319 = vset.pattern.permute.xlu0 0
      %320 = vperm.xlu0 %319, %v302
      %v321 = vpop.permute.xlu0 %320
      %v323 = vadd.f32 %v291, %v306
      %v324 = vadd.f32 %v292, %v306
      %v325 = vadd.f32 %v293, %v311
      %v326 = vadd.f32 %v294, %v311
      %v327 = vadd.f32 %v295, %v316
      %v328 = vadd.f32 %v296, %v316
      %v329 = vadd.f32 %v297, %v321
      %v330 = vadd.f32 %v298, %v321
      %v331 = vmax.f32 %v323, 0.0
      %v332 = vmax.f32 %v324, 0.0
      %v333 = vmax.f32 %v325, 0.0
      %v334 = vmax.f32 %v326, 0.0
      %v335 = vmax.f32 %v327, 0.0
      %v336 = vmax.f32 %v328, 0.0
      %v337 = vmax.f32 %v329, 0.0
      %v338 = vmax.f32 %v330, 0.0
      %339 = vst [vmem:[%s257] sm:$0xff] %v331
      %340 = vst [vmem:[%s257 + $0x8] sm:$0xff] %v332
      %341 = vst [vmem:[%s257 + $0x10] sm:$0xff] %v333
      %342 = vst [vmem:[%s257 + $0x18] sm:$0xff] %v334
      %343 = vst [vmem:[%s257 + $0x20] sm:$0xff] %v335
      %344 = vst [vmem:[%s257 + $0x28] sm:$0xff] %v336
      %345 = vst [vmem:[%s257 + $0x30] sm:$0xff] %v337
      %346 = vst [vmem:[%s257 + $0x38] sm:$0xff] %v338
      %s347 = smul.u32 4, %s19
      %p348 = scmp.lt.s32.totalorder %s18, 1
      %s349 = scalar_select %p348, %s18, 1
      %p350 = scmp.lt.s32.totalorder %s347, 7
      %s351 = scalar_select %p350, %s347, 7
      %s352 = smul.addr %s351, 2
      %s353 = smul.addr %s349, 16
      %s354 = sadd.s32 %s352, %s353
      %s355 = smul.addr %s354, 8
      %s356 = scalar_lea.vmem %s3, %s355
      // Predicated region
      $region33: #{conv_unit_forward.3} parent=31 // pred_check
        %p357 = pneg %p126
      $region34: #{conv_unit_forward.3} parent=31 // pred_check_branch
        %359 = sbr.rel (%p357) target = $region36
      $region35: #{conv_unit_forward.3} parent=31 // pred_region
        %s360 = smul.u32 4, %s19
      $region36: #{conv_unit_forward.3} parent=31 // pred_fallthru
        _
    $region32: #{conv_unit_forward.3} parent=5 // pred_fallthru
      _
    %p361 = scmp.le.s32.totalorder 2, %s9
    // Predicated region
    $region37: #{conv_unit_forward.3} parent=5 // pred_check
      %p362 = pneg %p361
    $region38: #{conv_unit_forward.3} parent=5 // pred_check_branch
      %364 = sbr.rel (%p362) target = $region40
    $region39: #{conv_unit_forward.3} parent=5 // pred_region
      %s365 = ssub.s32 %s9, 2
      // Predicated region
      $region41: #{conv_unit_forward.3} parent=39 // pred_check
        %p366 = pneg %p132
      $region42: #{conv_unit_forward.3} parent=39 // pred_check_branch
        %368 = sbr.rel (%p366) target = $region44
      $region43: #{conv_unit_forward.3} parent=39 // pred_region
        %s369 = smul.u32 4, %s21
        %p370 = scmp.lt.s32.totalorder %s20, 1
        %s371 = scalar_select %p370, %s20, 1
        %p372 = scmp.lt.s32.totalorder %s369, 7
        %s373 = scalar_select %p372, %s369, 7
        %s374 = smul.addr %s373, 2
        %s375 = smul.addr %s371, 16
        %s376 = sadd.s32 %s374, %s375
        %s377 = smul.addr %s376, 8
        %s378 = scalar_lea.vmem %s3, %s377
      $region44: #{conv_unit_forward.3} parent=39 // pred_fallthru
        _
    $region40: #{conv_unit_forward.3} parent=5 // pred_fallthru
      _
  $region6: #{conv_unit_forward.3} parent=0 // loop_footer
    %s13 = sadd.s32 1, %s9
  $region7: #{conv_unit_forward.3} parent=0 // loop_footer_branch
    %8 = sbr.rel target = $region3
  $region8: #{conv_unit_forward.3} parent=0 // loop_exit
    _

// kernel: conv_unit_forward.2
$region0: #{conv_unit_forward.2}
  #allocation0 [shape = 'u32[]', space=smem, size = 0x4, offset = 0x4, fixed_abs, tag = 'smem constant byte address 0x4 - core index']
  #allocation1 [shape = 'u32[72,128]{1,0:T(1,128)}', space=vmem, size = 0x9000, scoped, tag = 'internal scratch']
  %s0 = inlined_call_operand.vmem [shape: f32[2,3,288], index: 0, kind: input, shape index: {}]
  %s1 = inlined_call_operand.vmem [shape: f32[2,3,288], index: 1, kind: input, shape index: {}]
  %s2 = inlined_call_operand.vmem [shape: f32[2,3,288], index: 2, kind: input, shape index: {}]
  %s3 = inlined_call_operand.vmem [shape: f32[9,64,3], index: 3, kind: input, shape index: {}]
  %s4 = inlined_call_operand.vmem [shape: f32[2,64,256], index: 4, kind: output, shape index: {0}]
  %s5 = inlined_call_operand.vmem [shape: f32[2,64,2], index: 5, kind: output, shape index: {1}]
  %6 = xla_tuple %s4, %s5
  %s7 = sld [smem:[#allocation0]]
  $region95: #{conv_unit_forward.2} parent=0
    _
  %s9 = ssub.s32 1, %s7
  %s10 = scalar_select 0, %s9, %s7
  $region1: #{conv_unit_forward.2} parent=0
    #allocation2 [shape = 'u8[294912]{0}', space=vmem, size = 0x48000, scoped, tag = 'input window, operand 3']
    loop: start=0, step=1, limit=6
    $region2: #{conv_unit_forward.2} parent=1 // loop_pre_header
      _
    $region3: #{conv_unit_forward.2} parent=1 // loop_header
      %s12 = sphi 0, %s16
      %p13 = scmp.ge.s32.totalorder %s12, 6
      %s19 = sphi 0, %s31
      %s20 = sphi 0, %s27
      %s21 = sphi 0, %s19
      %s22 = sphi 0, %s20
      %s23 = sphi 0, %s21
      %s24 = sphi 0, %s22
      %s34 = sphi 0, %s36
      %s37 = sphi 0, %s34
      %s38 = sphi 0, %s37
      %s54 = sphi 0, %s38
      %s60 = sphi 0, %s62
      %s63 = sphi 0, %s60
      %s64 = sphi 0, %s63
      %s80 = sphi 0, %s64
      %s86 = sphi 0, %s88
      %s89 = sphi 0, %s86
      %s90 = sphi 0, %s89
      %s106 = sphi 0, %s90
      %s112 = sphi 0, %s114
      %s115 = sphi 0, %s112
      %s116 = sphi 0, %s115
      %s132 = sphi 0, %s116
      %s140 = sphi 0, %s142
      %s143 = sphi 0, %s140
      %s144 = sphi 0, %s143
      %s160 = sphi 0, %s144
      %s168 = sphi 0, %s170
      %s171 = sphi 0, %s168
      %s172 = sphi 0, %s171
      %s188 = sphi 0, %s172
    $region4: #{conv_unit_forward.2} parent=1 // loop_header_branch
      %15 = sbr.rel (%p13) target = $region8
    $region5: #{conv_unit_forward.2} parent=1 // loop_body
      %s17 = ssub.s32 %s12, 1
      %s18 = ssub.s32 %s12, 2
      %s25 = sadd.s32 1, %s20
      %p26 = scmp.ge.s32.totalorder %s25, 2
      %s27 = scalar_select %p26, 0, %s25
      %s28 = sadd.s32 1, %s19
      %s29 = scalar_select %p26, %s28, %s19
      %p30 = scmp.ge.s32.totalorder %s29, 2
      %s31 = scalar_select %p30, 0, %s29
      %s32 = ssub.s32 %s19, %s31
      %p33 = scmp.eq.s32.totalorder %s32, 0
      %s35 = sadd.s32 %s34, 1
      %s36 = scalar_select %p33, %s34, %s35
      %p39 = pneg %p33
      %p40 = scmp.eq.s32.totalorder %s12, 3
      %p41 = por %p39, %p40
      %p42 = scmp.ne.s32.totalorder %s34, %s37
      %p43 = scmp.eq.s32.totalorder %s12, 0
      %p44 = por %p42, %p43
      %p45 = scmp.ne.s32.totalorder %s34, %s37
      %p46 = scmp.eq.s32.totalorder %s17, 3
      %p47 = por %p45, %p46
      %p48 = scmp.ne.s32.totalorder %s37, %s38
      %p49 = scmp.eq.s32.totalorder %s17, 0
      %p50 = por %p48, %p49
      %p51 = scmp.ne.s32.totalorder %s37, %s38
      %p52 = scmp.eq.s32.totalorder %s18, 3
      %p53 = por %p51, %p52
      %p55 = scmp.ne.s32.totalorder %s38, %s54
      %p56 = scmp.eq.s32.totalorder %s18, 0
      %p57 = por %p55, %p56
      %s58 = ssub.s32 %s19, %s31
      %p59 = scmp.eq.s32.totalorder %s58, 0
      %s61 = sadd.s32 %s60, 1
      %s62 = scalar_select %p59, %s60, %s61
      %p65 = pneg %p59
      %p66 = scmp.eq.s32.totalorder %s12, 3
      %p67 = por %p65, %p66
      %p68 = scmp.ne.s32.totalorder %s60, %s63
      %p69 = scmp.eq.s32.totalorder %s12, 0
      %p70 = por %p68, %p69
      %p71 = scmp.ne.s32.totalorder %s60, %s63
      %p72 = scmp.eq.s32.totalorder %s17, 3
      %p73 = por %p71, %p72
      %p74 = scmp.ne.s32.totalorder %s63, %s64
      %p75 = scmp.eq.s32.totalorder %s17, 0
      %p76 = por %p74, %p75
      %p77 = scmp.ne.s32.totalorder %s63, %s64
      %p78 = scmp.eq.s32.totalorder %s18, 3
      %p79 = por %p77, %p78
      %p81 = scmp.ne.s32.totalorder %s64, %s80
      %p82 = scmp.eq.s32.totalorder %s18, 0
      %p83 = por %p81, %p82
      %s84 = ssub.s32 %s19, %s31
      %p85 = scmp.eq.s32.totalorder %s84, 0
      %s87 = sadd.s32 %s86, 1
      %s88 = scalar_select %p85, %s86, %s87
      %p91 = pneg %p85
      %p92 = scmp.eq.s32.totalorder %s12, 3
      %p93 = por %p91, %p92
      %p94 = scmp.ne.s32.totalorder %s86, %s89
      %p95 = scmp.eq.s32.totalorder %s12, 0
      %p96 = por %p94, %p95
      %p97 = scmp.ne.s32.totalorder %s86, %s89
      %p98 = scmp.eq.s32.totalorder %s17, 3
      %p99 = por %p97, %p98
      %p100 = scmp.ne.s32.totalorder %s89, %s90
      %p101 = scmp.eq.s32.totalorder %s17, 0
      %p102 = por %p100, %p101
      %p103 = scmp.ne.s32.totalorder %s89, %s90
      %p104 = scmp.eq.s32.totalorder %s18, 3
      %p105 = por %p103, %p104
      %p107 = scmp.ne.s32.totalorder %s90, %s106
      %p108 = scmp.eq.s32.totalorder %s18, 0
      %p109 = por %p107, %p108
      %s110 = ssub.s32 %s20, %s27
      %p111 = scmp.eq.s32.totalorder %s110, 0
      %s113 = sadd.s32 %s112, 1
      %s114 = scalar_select %p111, %s112, %s113
      %p117 = pneg %p111
      %p118 = scmp.eq.s32.totalorder %s12, 3
      %p119 = por %p117, %p118
      %p120 = scmp.ne.s32.totalorder %s112, %s115
      %p121 = scmp.eq.s32.totalorder %s12, 0
      %p122 = por %p120, %p121
      %p123 = scmp.ne.s32.totalorder %s112, %s115
      %p124 = scmp.eq.s32.totalorder %s17, 3
      %p125 = por %p123, %p124
      %p126 = scmp.ne.s32.totalorder %s115, %s116
      %p127 = scmp.eq.s32.totalorder %s17, 0
      %p128 = por %p126, %p127
      %p129 = scmp.ne.s32.totalorder %s115, %s116
      %p130 = scmp.eq.s32.totalorder %s18, 3
      %p131 = por %p129, %p130
      %p133 = scmp.ne.s32.totalorder %s116, %s132
      %p134 = scmp.eq.s32.totalorder %s18, 0
      %p135 = por %p133, %p134
      %s136 = ssub.s32 %s19, %s31
      %s137 = ssub.s32 %s20, %s27
      %s138 = sor.u32 %s136, %s137
      %p139 = scmp.eq.s32.totalorder %s138, 0
      %s141 = sadd.s32 %s140, 1
      %s142 = scalar_select %p139, %s140, %s141
      %p145 = pneg %p139
      %p146 = scmp.eq.s32.totalorder %s12, 3
      %p147 = por %p145, %p146
      %p148 = scmp.ne.s32.totalorder %s140, %s143
      %p149 = scmp.eq.s32.totalorder %s12, 0
      %p150 = por %p148, %p149
      %p151 = scmp.ne.s32.totalorder %s140, %s143
      %p152 = scmp.eq.s32.totalorder %s17, 3
      %p153 = por %p151, %p152
      %p154 = scmp.ne.s32.totalorder %s143, %s144
      %p155 = scmp.eq.s32.totalorder %s17, 0
      %p156 = por %p154, %p155
      %p157 = scmp.ne.s32.totalorder %s143, %s144
      %p158 = scmp.eq.s32.totalorder %s18, 3
      %p159 = por %p157, %p158
      %p161 = scmp.ne.s32.totalorder %s144, %s160
      %p162 = scmp.eq.s32.totalorder %s18, 0
      %p163 = por %p161, %p162
      %s164 = ssub.s32 %s19, %s31
      %s165 = ssub.s32 %s20, %s27
      %s166 = sor.u32 %s164, %s165
      %p167 = scmp.eq.s32.totalorder %s166, 0
      %s169 = sadd.s32 %s168, 1
      %s170 = scalar_select %p167, %s168, %s169
      %p173 = pneg %p167
      %p174 = scmp.eq.s32.totalorder %s12, 3
      %p175 = por %p173, %p174
      %p176 = scmp.ne.s32.totalorder %s168, %s171
      %p177 = scmp.eq.s32.totalorder %s12, 0
      %p178 = por %p176, %p177
      %p179 = scmp.ne.s32.totalorder %s168, %s171
      %p180 = scmp.eq.s32.totalorder %s17, 3
      %p181 = por %p179, %p180
      %p182 = scmp.ne.s32.totalorder %s171, %s172
      %p183 = scmp.eq.s32.totalorder %s17, 0
      %p184 = por %p182, %p183
      %p185 = scmp.ne.s32.totalorder %s171, %s172
      %p186 = scmp.eq.s32.totalorder %s18, 3
      %p187 = por %p185, %p186
      %p189 = scmp.ne.s32.totalorder %s172, %s188
      %p190 = scmp.eq.s32.totalorder %s18, 0
      %p191 = por %p189, %p190
      %p192 = scmp.le.s32.totalorder 1, %s12
      %p193 = scmp.lt.s32.totalorder %s12, 5
      %p194 = pnand %p192, %p193
      %p195 = pneg %p194
      // Predicated region
      $region9: #{conv_unit_forward.2} parent=5 // pred_check
        _
      $region10: #{conv_unit_forward.2} parent=5 // pred_check_branch
        %197 = sbr.rel (%p194) target = $region12
      $region11: #{conv_unit_forward.2} parent=5 // pred_region
        %s198 = ssub.s32 %s12, 1
      $region12: #{conv_unit_forward.2} parent=5 // pred_fallthru
        _
      %p199 = scmp.lt.s32.totalorder %s12, 4
      // Predicated region
      $region13: #{conv_unit_forward.2} parent=5 // pred_check
        %p200 = pneg %p199
      $region14: #{conv_unit_forward.2} parent=5 // pred_check_branch
        %202 = sbr.rel (%p200) target = $region16
      $region15: #{conv_unit_forward.2} parent=5 // pred_region
        // Predicated region
        $region17: #{conv_unit_forward.2} parent=15 // pred_check
          %p203 = pneg %p44
        $region18: #{conv_unit_forward.2} parent=15 // pred_check_branch
          %205 = sbr.rel (%p203) target = $region20
        $region19: #{conv_unit_forward.2} parent=15 // pred_region
          %p206 = scmp.lt.s32.totalorder %s19, 1
          %s207 = scalar_select %p206, %s19, 1
          %s208 = smul.addr %s207, 3
          %s209 = smul.addr %s208, 4
          %s210 = scalar_lea.vmem %s0, %s209
        $region20: #{conv_unit_forward.2} parent=15 // pred_fallthru
          _
        // Predicated region
        $region21: #{conv_unit_forward.2} parent=15 // pred_check
          %p211 = pneg %p70
        $region22: #{conv_unit_forward.2} parent=15 // pred_check_branch
          %213 = sbr.rel (%p211) target = $region24
        $region23: #{conv_unit_forward.2} parent=15 // pred_region
          %p214 = scmp.lt.s32.totalorder %s19, 1
          %s215 = scalar_select %p214, %s19, 1
          %s216 = smul.addr %s215, 3
          %s217 = smul.addr %s216, 4
          %s218 = scalar_lea.vmem %s1, %s217
        $region24: #{conv_unit_forward.2} parent=15 // pred_fallthru
          _
        // Predicated region
        $region25: #{conv_unit_forward.2} parent=15 // pred_check
          %p219 = pneg %p96
        $region26: #{conv_unit_forward.2} parent=15 // pred_check_branch
          %221 = sbr.rel (%p219) target = $region28
        $region27: #{conv_unit_forward.2} parent=15 // pred_region
          %p222 = scmp.lt.s32.totalorder %s19, 1
          %s223 = scalar_select %p222, %s19, 1
          %s224 = smul.addr %s223, 3
          %s225 = smul.addr %s224, 4
          %s226 = scalar_lea.vmem %s2, %s225
        $region28: #{conv_unit_forward.2} parent=15 // pred_fallthru
          _
        // Predicated region
        $region29: #{conv_unit_forward.2} parent=15 // pred_check
          %p227 = pneg %p122
        $region30: #{conv_unit_forward.2} parent=15 // pred_check_branch
          %229 = sbr.rel (%p227) target = $region32
        $region31: #{conv_unit_forward.2} parent=15 // pred_region
          %s230 = sand.u32 %s112, 1
          %s231 = sand.u32 %s112, 1
          %s232 = smul.addr %s231, 288
          %s233 = scalar_lea.vmem [#allocation2], %s232
          %s234 = smul.u32 4, %s20
          %s235 = smul.addr %s234, 8
          %s236 = scalar_lea.vmem %s3, %s235
          // Predicated region
          $region33: #{conv_unit_forward.2} parent=31 // pred_check
            _
          $region34: #{conv_unit_forward.2} parent=31 // pred_check_branch
            %238 = sbr.rel (0) target = $region36
          $region35: #{conv_unit_forward.2} parent=31 // pred_region
            // Predicated region
            $region37: #{conv_unit_forward.2} parent=35 // pred_check
              _
            $region38: #{conv_unit_forward.2} parent=35 // pred_check_branch
              %240 = sbr.rel (0) target = $region40
            $region39: #{conv_unit_forward.2} parent=35 // pred_region
              // Predicated region
              $region52: #{conv_unit_forward.2} parent=39 // pred_check
                _
              $region53: #{conv_unit_forward.2} parent=39 // pred_check_branch
                %326 = sbr.rel (0) target = $region55
              $region54: #{conv_unit_forward.2} parent=39 // pred_region
                loop: start=0, step=1, limit=1
                $region56: #{conv_unit_forward.2} parent=54 // loop_pre_header
                  _
                $region57: #{conv_unit_forward.2} parent=54 // loop_header
                  %s328 = sphi 0, %s332
                  %p329 = scmp.ge.s32.totalorder %s328, 1
                  %s333 = sphi %s236, %s236
                  %s334 = sphi %s233, %s233
                $region58: #{conv_unit_forward.2} parent=54 // loop_header_branch
                  %331 = sbr.rel (%p329) target = $region62
                $region59: #{conv_unit_forward.2} parent=54 // loop_body
                  %v335 = vld [vmem:[%s333] sm:$0xff]
                  %336 = vst [vmem:[%s334] sm:$0xff] %v335
                  %v337 = vld [vmem:[%s333 + $0x8] sm:$0xff]
                  %338 = vst [vmem:[%s334 + $0x8] sm:$0xff] %v337
                  %v339 = vld [vmem:[%s333 + $0x10] sm:$0xff]
                  %340 = vst [vmem:[%s334 + $0x10] sm:$0xff] %v339
                  %v341 = vld [vmem:[%s333 + $0x18] sm:$0xff]
                  %342 = vst [vmem:[%s334 + $0x18] sm:$0xff] %v341
                  %v343 = vld [vmem:[%s333 + $0x40] sm:$0xff]
                  %344 = vst [vmem:[%s334 + $0x20] sm:$0xff] %v343
                  %v345 = vld [vmem:[%s333 + $0x48] sm:$0xff]
                  %346 = vst [vmem:[%s334 + $0x28] sm:$0xff] %v345
                  %v347 = vld [vmem:[%s333 + $0x50] sm:$0xff]
                  %348 = vst [vmem:[%s334 + $0x30] sm:$0xff] %v347
                  %v349 = vld [vmem:[%s333 + $0x58] sm:$0xff]
                  %350 = vst [vmem:[%s334 + $0x38] sm:$0xff] %v349
                  %v351 = vld [vmem:[%s333 + $0x80] sm:$0xff]
                  %352 = vst [vmem:[%s334 + $0x40] sm:$0xff] %v351
                  %v353 = vld [vmem:[%s333 + $0x88] sm:$0xff]
                  %354 = vst [vmem:[%s334 + $0x48] sm:$0xff] %v353
                  %v355 = vld [vmem:[%s333 + $0x90] sm:$0xff]
                  %356 = vst [vmem:[%s334 + $0x50] sm:$0xff] %v355
                  %v357 = vld [vmem:[%s333 + $0x98] sm:$0xff]
                  %358 = vst [vmem:[%s334 + $0x58] sm:$0xff] %v357
                  %v359 = vld [vmem:[%s333 + $0xc0] sm:$0xff]
                  %360 = vst [vmem:[%s334 + $0x60] sm:$0xff] %v359
                  %v361 = vld [vmem:[%s333 + $0xc8] sm:$0xff]
                  %362 = vst [vmem:[%s334 + $0x68] sm:$0xff] %v361
                  %v363 = vld [vmem:[%s333 + $0xd0] sm:$0xff]
                  %364 = vst [vmem:[%s334 + $0x70] sm:$0xff] %v363
                  %v365 = vld [vmem:[%s333 + $0xd8] sm:$0xff]
                  %366 = vst [vmem:[%s334 + $0x78] sm:$0xff] %v365
                  %v367 = vld [vmem:[%s333 + $0x100] sm:$0xff]
                  %368 = vst [vmem:[%s334 + $0x80] sm:$0xff] %v367
                  %v369 = vld [vmem:[%s333 + $0x108] sm:$0xff]
                  %370 = vst [vmem:[%s334 + $0x88] sm:$0xff] %v369
                  %v371 = vld [vmem:[%s333 + $0x110] sm:$0xff]
                  %372 = vst [vmem:[%s334 + $0x90] sm:$0xff] %v371
                  %v373 = vld [vmem:[%s333 + $0x118] sm:$0xff]
                  %374 = vst [vmem:[%s334 + $0x98] sm:$0xff] %v373
                  %v375 = vld [vmem:[%s333 + $0x140] sm:$0xff]
                  %376 = vst [vmem:[%s334 + $0xa0] sm:$0xff] %v375
                  %v377 = vld [vmem:[%s333 + $0x148] sm:$0xff]
                  %378 = vst [vmem:[%s334 + $0xa8] sm:$0xff] %v377
                  %v379 = vld [vmem:[%s333 + $0x150] sm:$0xff]
                  %380 = vst [vmem:[%s334 + $0xb0] sm:$0xff] %v379
                  %v381 = vld [vmem:[%s333 + $0x158] sm:$0xff]
                  %382 = vst [vmem:[%s334 + $0xb8] sm:$0xff] %v381
                  %v383 = vld [vmem:[%s333 + $0x180] sm:$0xff]
                  %384 = vst [vmem:[%s334 + $0xc0] sm:$0xff] %v383
                  %v385 = vld [vmem:[%s333 + $0x188] sm:$0xff]
                  %386 = vst [vmem:[%s334 + $0xc8] sm:$0xff] %v385
                  %v387 = vld [vmem:[%s333 + $0x190] sm:$0xff]
                  %388 = vst [vmem:[%s334 + $0xd0] sm:$0xff] %v387
                  %v389 = vld [vmem:[%s333 + $0x198] sm:$0xff]
                  %390 = vst [vmem:[%s334 + $0xd8] sm:$0xff] %v389
                  %v391 = vld [vmem:[%s333 + $0x1c0] sm:$0xff]
                  %392 = vst [vmem:[%s334 + $0xe0] sm:$0xff] %v391
                  %v393 = vld [vmem:[%s333 + $0x1c8] sm:$0xff]
                  %394 = vst [vmem:[%s334 + $0xe8] sm:$0xff] %v393
                  %v395 = vld [vmem:[%s333 + $0x1d0] sm:$0xff]
                  %396 = vst [vmem:[%s334 + $0xf0] sm:$0xff] %v395
                  %v397 = vld [vmem:[%s333 + $0x1d8] sm:$0xff]
                  %398 = vst [vmem:[%s334 + $0xf8] sm:$0xff] %v397
                  %v399 = vld [vmem:[%s333 + $0x200] sm:$0xff]
                  %400 = vst [vmem:[%s334 + $0x100] sm:$0xff] %v399
                  %v401 = vld [vmem:[%s333 + $0x208] sm:$0xff]
                  %402 = vst [vmem:[%s334 + $0x108] sm:$0xff] %v401
                  %v403 = vld [vmem:[%s333 + $0x210] sm:$0xff]
                  %404 = vst [vmem:[%s334 + $0x110] sm:$0xff] %v403
                  %v405 = vld [vmem:[%s333 + $0x218] sm:$0xff]
                  %406 = vst [vmem:[%s334 + $0x118] sm:$0xff] %v405
                $region60: #{conv_unit_forward.2} parent=54 // loop_footer
                  %s332 = sadd.s32 1, %s328
                $region61: #{conv_unit_forward.2} parent=54 // loop_footer_branch
                  %327 = sbr.rel target = $region57
                $region62: #{conv_unit_forward.2} parent=54 // loop_exit
                  _
              $region55: #{conv_unit_forward.2} parent=39 // pred_fallthru
                _
              // Predicated region
              $region63: #{conv_unit_forward.2} parent=39 // pred_check
                _
              $region64: #{conv_unit_forward.2} parent=39 // pred_check_branch
                %408 = sbr.rel target = $region66
              $region65: #{conv_unit_forward.2} parent=39 // pred_region
                _
              $region66: #{conv_unit_forward.2} parent=39 // pred_fallthru
                _
            $region40: #{conv_unit_forward.2} parent=35 // pred_fallthru
              _
            // Predicated region
            $region41: #{conv_unit_forward.2} parent=35 // pred_check
              _
            $region42: #{conv_unit_forward.2} parent=35 // pred_check_branch
              %242 = sbr.rel target = $region44
            $region43: #{conv_unit_forward.2} parent=35 // pred_region
              %s244 = ssub.s32 256, 1
              loop: start=0, step=1, limit=1
              $region45: #{conv_unit_forward.2} parent=43 // loop_pre_header
                _
              $region46: #{conv_unit_forward.2} parent=43 // loop_header
                %s246 = sphi 0, %s250
                %p247 = scmp.ge.s32.totalorder %s246, 1
                %s251 = sphi %s236, %s236
                %s252 = sphi %s233, %s233
              $region47: #{conv_unit_forward.2} parent=43 // loop_header_branch
                %249 = sbr.rel (%p247) target = $region51
              $region48: #{conv_unit_forward.2} parent=43 // loop_body
                %v253 = vld [vmem:[%s251] sm:%s244]
                %254 = vst [vmem:[%s252] sm:%s244] %v253
                %v255 = vld [vmem:[%s251 + $0x8] sm:%s244]
                %256 = vst [vmem:[%s252 + $0x8] sm:%s244] %v255
                %v257 = vld [vmem:[%s251 + $0x10] sm:%s244]
                %258 = vst [vmem:[%s252 + $0x10] sm:%s244] %v257
                %v259 = vld [vmem:[%s251 + $0x18] sm:%s244]
                %260 = vst [vmem:[%s252 + $0x18] sm:%s244] %v259
                %v261 = vld [vmem:[%s251 + $0x40] sm:%s244]
                %262 = vst [vmem:[%s252 + $0x20] sm:%s244] %v261
                %v263 = vld [vmem:[%s251 + $0x48] sm:%s244]
                %264 = vst [vmem:[%s252 + $0x28] sm:%s244] %v263
                %v265 = vld [vmem:[%s251 + $0x50] sm:%s244]
                %266 = vst [vmem:[%s252 + $0x30] sm:%s244] %v265
                %v267 = vld [vmem:[%s251 + $0x58] sm:%s244]
                %268 = vst [vmem:[%s252 + $0x38] sm:%s244] %v267
                %v269 = vld [vmem:[%s251 + $0x80] sm:%s244]
                %270 = vst [vmem:[%s252 + $0x40] sm:%s244] %v269
                %v271 = vld [vmem:[%s251 + $0x88] sm:%s244]
                %272 = vst [vmem:[%s252 + $0x48] sm:%s244] %v271
                %v273 = vld [vmem:[%s251 + $0x90] sm:%s244]
                %274 = vst [vmem:[%s252 + $0x50] sm:%s244] %v273
                %v275 = vld [vmem:[%s251 + $0x98] sm:%s244]
                %276 = vst [vmem:[%s252 + $0x58] sm:%s244] %v275
                %v277 = vld [vmem:[%s251 + $0xc0] sm:%s244]
                %278 = vst [vmem:[%s252 + $0x60] sm:%s244] %v277
                %v279 = vld [vmem:[%s251 + $0xc8] sm:%s244]
                %280 = vst [vmem:[%s252 + $0x68] sm:%s244] %v279
                %v281 = vld [vmem:[%s251 + $0xd0] sm:%s244]
                %282 = vst [vmem:[%s252 + $0x70] sm:%s244] %v281
                %v283 = vld [vmem:[%s251 + $0xd8] sm:%s244]
                %284 = vst [vmem:[%s252 + $0x78] sm:%s244] %v283
                %v285 = vld [vmem:[%s251 + $0x100] sm:%s244]
                %286 = vst [vmem:[%s252 + $0x80] sm:%s244] %v285
                %v287 = vld [vmem:[%s251 + $0x108] sm:%s244]
                %288 = vst [vmem:[%s252 + $0x88] sm:%s244] %v287
                %v289 = vld [vmem:[%s251 + $0x110] sm:%s244]
                %290 = vst [vmem:[%s252 + $0x90] sm:%s244] %v289
                %v291 = vld [vmem:[%s251 + $0x118] sm:%s244]
                %292 = vst [vmem:[%s252 + $0x98] sm:%s244] %v291
                %v293 = vld [vmem:[%s251 + $0x140] sm:%s244]
                %294 = vst [vmem:[%s252 + $0xa0] sm:%s244] %v293
                %v295 = vld [vmem:[%s251 + $0x148] sm:%s244]
                %296 = vst [vmem:[%s252 + $0xa8] sm:%s244] %v295
                %v297 = vld [vmem:[%s251 + $0x150] sm:%s244]
                %298 = vst [vmem:[%s252 + $0xb0] sm:%s244] %v297
                %v299 = vld [vmem:[%s251 + $0x158] sm:%s244]
                %300 = vst [vmem:[%s252 + $0xb8] sm:%s244] %v299
                %v301 = vld [vmem:[%s251 + $0x180] sm:%s244]
                %302 = vst [vmem:[%s252 + $0xc0] sm:%s244] %v301
                %v303 = vld [vmem:[%s251 + $0x188] sm:%s244]
                %304 = vst [vmem:[%s252 + $0xc8] sm:%s244] %v303
                %v305 = vld [vmem:[%s251 + $0x190] sm:%s244]
                %306 = vst [vmem:[%s252 + $0xd0] sm:%s244] %v305
                %v307 = vld [vmem:[%s251 + $0x198] sm:%s244]
                %308 = vst [vmem:[%s252 + $0xd8] sm:%s244] %v307
                %v309 = vld [vmem:[%s251 + $0x1c0] sm:%s244]
                %310 = vst [vmem:[%s252 + $0xe0] sm:%s244] %v309
                %v311 = vld [vmem:[%s251 + $0x1c8] sm:%s244]
                %312 = vst [vmem:[%s252 + $0xe8] sm:%s244] %v311
                %v313 = vld [vmem:[%s251 + $0x1d0] sm:%s244]
                %314 = vst [vmem:[%s252 + $0xf0] sm:%s244] %v313
                %v315 = vld [vmem:[%s251 + $0x1d8] sm:%s244]
                %316 = vst [vmem:[%s252 + $0xf8] sm:%s244] %v315
                %v317 = vld [vmem:[%s251 + $0x200] sm:%s244]
                %318 = vst [vmem:[%s252 + $0x100] sm:%s244] %v317
                %v319 = vld [vmem:[%s251 + $0x208] sm:%s244]
                %320 = vst [vmem:[%s252 + $0x108] sm:%s244] %v319
                %v321 = vld [vmem:[%s251 + $0x210] sm:%s244]
                %322 = vst [vmem:[%s252 + $0x110] sm:%s244] %v321
                %v323 = vld [vmem:[%s251 + $0x218] sm:%s244]
                %324 = vst [vmem:[%s252 + $0x118] sm:%s244] %v323
              $region49: #{conv_unit_forward.2} parent=43 // loop_footer
                %s250 = sadd.s32 1, %s246
              $region50: #{conv_unit_forward.2} parent=43 // loop_footer_branch
                %245 = sbr.rel target = $region46
              $region51: #{conv_unit_forward.2} parent=43 // loop_exit
                _
            $region44: #{conv_unit_forward.2} parent=35 // pred_fallthru
              _
          $region36: #{conv_unit_forward.2} parent=31 // pred_fallthru
            _
          %409 = vnop
        $region32: #{conv_unit_forward.2} parent=15 // pred_fallthru
          _
      $region16: #{conv_unit_forward.2} parent=5 // pred_fallthru
        _
      %p410 = scmp.le.s32.totalorder 1, %s12
      %p411 = scmp.lt.s32.totalorder %s12, 5
      %p412 = pnand %p410, %p411
      %p413 = pneg %p412
      // Predicated region
      $region67: #{conv_unit_forward.2} parent=5 // pred_check
        _
      $region68: #{conv_unit_forward.2} parent=5 // pred_check_branch
        %415 = sbr.rel (%p412) target = $region70
      $region69: #{conv_unit_forward.2} parent=5 // pred_region
        %s416 = ssub.s32 %s12, 1
        %s417 = sand.u32 %s115, 1
        %s418 = sand.u32 %s115, 1
        %s419 = smul.addr %s418, 288
        %s420 = scalar_lea.vmem [#allocation2], %s419
        // Predicated region
        $region71: #{conv_unit_forward.2} parent=69 // pred_check
          %p421 = pneg %p128
        $region72: #{conv_unit_forward.2} parent=69 // pred_check_branch
          %423 = sbr.rel (%p421) target = $region74
        $region73: #{conv_unit_forward.2} parent=69 // pred_region
          _
        $region74: #{conv_unit_forward.2} parent=69 // pred_fallthru
          _
        %p424 = scmp.lt.s32.totalorder %s21, 1
        %s425 = scalar_select %p424, %s21, 1
        %s426 = smul.addr %s425, 3
        %s427 = smul.addr %s426, 4
        %s428 = scalar_lea.vmem %s0, %s427
        %p429 = pneg %p50
        %p430 = pneg %p47
        %p431 = scmp.lt.s32.totalorder %s21, 1
        %s432 = scalar_select %p431, %s21, 1
        %s433 = smul.addr %s432, 3
        %s434 = smul.addr %s433, 4
        %s435 = scalar_lea.vmem %s1, %s434
        %p436 = pneg %p76
        %p437 = pneg %p73
        %p438 = scmp.lt.s32.totalorder %s21, 1
        %s439 = scalar_select %p438, %s21, 1
        %s440 = smul.addr %s439, 3
        %s441 = smul.addr %s440, 4
        %s442 = scalar_lea.vmem %s2, %s441
        %p443 = pneg %p102
        %p444 = pneg %p99
        %s445 = sand.u32 %s115, 1
        %s446 = sand.u32 %s115, 1
        %s447 = smul.addr %s446, 288
        %s448 = scalar_lea.vmem [#allocation2], %s447
        %p449 = pneg %p128
        %p450 = pneg %p125
        %p451 = pneg %p156
        %p452 = pneg %p153
        %s453 = smul.u32 4, %s22
        %p454 = scmp.lt.s32.totalorder %s21, 1
        %s455 = scalar_select %p454, %s21, 1
        %p456 = scmp.lt.s32.totalorder %s453, 7
        %s457 = scalar_select %p456, %s453, 7
        %s458 = smul.addr %s457, 2
        %s459 = smul.addr %s455, 16
        %s460 = sadd.s32 %s458, %s459
        %s461 = smul.addr %s460, 8
        %s462 = scalar_lea.vmem %s4, %s461
        %p463 = pneg %p184
        %p464 = pneg %p181
        %s465 = smul.u32 4, %s22
        %p466 = scmp.lt.s32.totalorder %s21, 1
        %s467 = scalar_select %p466, %s21, 1
        %p468 = scmp.lt.s32.totalorder %s465, 7
        %s469 = scalar_select %p468, %s465, 7
        %s470 = smul.addr %s467, 8
        %s471 = sadd.s32 %s469, %s470
        %s472 = smul.addr %s471, 8
        %s473 = scalar_lea.vmem %s5, %s472
        %p474 = scmp.lt.s32.totalorder %s21, 1
        %s475 = scalar_select %p474, %s21, 1
        %s476 = smul.addr %s475, 3
        %s477 = smul.addr %s476, 4
        %s478 = scalar_lea.vmem %s0, %s477
        %p479 = scmp.lt.s32.totalorder %s21, 1
        %s480 = scalar_select %p479, %s21, 1
        %s481 = smul.addr %s480, 3
        %s482 = smul.addr %s481, 4
        %s483 = scalar_lea.vmem %s1, %s482
        %p484 = scmp.lt.s32.totalorder %s21, 1
        %s485 = scalar_select %p484, %s21, 1
        %s486 = smul.addr %s485, 3
        %s487 = smul.addr %s486, 4
        %s488 = scalar_lea.vmem %s2, %s487
        %s489 = smul.u32 4, %s22
        %s490 = smul.u32 4, %s22
        %p491 = scmp.lt.s32.totalorder %s21, 1
        %s492 = scalar_select %p491, %s21, 1
        %p493 = scmp.lt.s32.totalorder %s490, 7
        %s494 = scalar_select %p493, %s490, 7
        %s495 = smul.addr %s494, 2
        %s496 = smul.addr %s492, 16
        %s497 = sadd.s32 %s495, %s496
        %s498 = smul.addr %s497, 8
        %s499 = scalar_lea.vmem %s4, %s498
        %s500 = smul.u32 4, %s22
        %s501 = smul.u32 4, %s22
        %p502 = scmp.lt.s32.totalorder %s21, 1
        %s503 = scalar_select %p502, %s21, 1
        %p504 = scmp.lt.s32.totalorder %s501, 7
        %s505 = scalar_select %p504, %s501, 7
        %s506 = smul.addr %s503, 8
        %s507 = sadd.s32 %s505, %s506
        %s508 = smul.addr %s507, 8
        %s509 = scalar_lea.vmem %s5, %s508
        %s510 = smul.u32 4, %s22
        %v511 = vld [vmem:[%s478] sm:$0x77]
        %v512 = vld [vmem:[%s420] sm:$0xff]
        %v513 = vld [vmem:[%s420 + $0x8] sm:$0xff]
        %v514 = vld [vmem:[%s420 + $0x10] sm:$0xff]
        %v515 = vld [vmem:[%s420 + $0x18] sm:$0xff]
        %v516 = vld [vmem:[%s478 + $0x8] sm:$0x7]
        %s517 = scalar_lea.vmem %s420, 96 [#allocation2]
        %v518 = vld [vmem:[%s517] sm:$0xff]
        %v519 = vld [vmem:[%s517 + $0x8] sm:$0xff]
        %v520 = vld [vmem:[%s517 + $0x10] sm:$0xff]
        %v521 = vld [vmem:[%s517 + $0x18] sm:$0xff]
        %524 = vst [vmem:[#allocation1] ss:$2 sm:$0xff] %v511
        %s525 = scalar_lea.vmem [#allocation1], 16
        %526 = vst [vmem:[%s525] ss:$2 sm:$0xff] %v516
        %v527 = vld.sshfl [vmem:[#allocation1] sm:$0xff pattern:$0x75316420]
        %v528 = vld.sshfl [vmem:[#allocation1 + $0x8] sm:$0xff pattern:$0x75316420]
        %v529 = vld.sshfl [vmem:[#allocation1 + $0x10] sm:$0xff pattern:$0x75316420]
        %530 = vrot.lane.b32.xlu0 %v527, 112
        %v531 = vpop.permute.xlu0 %530
        %532 = vrot.lane.b32.xlu0 %v528, 112
        %v533 = vpop.permute.xlu0 %532
        %534 = vrot.lane.b32.xlu0 %v529, 112
        %v535 = vpop.permute.xlu0 %534
        %vm536 = vcmask 916480
        %v537 = vsel %vm536, %v531, %v533
        %v538 = vsel %vm536, %v533, %v535
        %vm539 = vcmask 23552
        %v541 = vsel %vm539, %v518, 0
        %v544 = vsel %vm539, %v519, 0
        %v547 = vsel %vm539, %v520, 0
        %v550 = vsel %vm539, %v521, 0
        %vm552 = vcmask 1042432
        %v553 = vsel %vm552, %v537, 0
        %v555 = vsel %vm552, %v538, 0
        %557 = vmatpush.msra.mxu0 0.0
        %558 = vmatpush.msra.mxu0 0.0
        %559 = vmatpush.msra.mxu0 0.0
        %560 = vmatpush.msra.mxu0 0.0
        %561 = vmatpush.msra.mxu0 0.0
        %562 = vmatpush.msra.mxu0 0.0
        %563 = vmatpush.msra.mxu0 0.0
        %564 = vmatpush.msra.mxu0 0.0
        %565 = vmatpush.msra.mxu0 0.0
        %566 = vmatpush.msra.mxu0 0.0
        %567 = vmatpush.msra.mxu0 0.0
        %568 = vmatpush.msra.mxu0 0.0
        %569 = vmatpush.msra.mxu0 0.0
        %570 = vmatpush.msra.mxu0 0.0
        %571 = vmatpush.msra.mxu0 0.0
        %572 = vmatpush.msra.mxu0 %v553
        %573 = vmatmul.f32.gmra.mxu0 %v541
        %v574 = vpop.f32.mrf.mxu0
        %v575 = vadd.f32 0.0, %v574
        %576 = vmatmul.f32.gmra.mxu0 %v544
        %v577 = vpop.f32.mrf.mxu0
        %v578 = vadd.f32 0.0, %v577
        %579 = vmatmul.f32.gmra.mxu0 %v547
        %v580 = vpop.f32.mrf.mxu0
        %v581 = vadd.f32 0.0, %v580
        %582 = vmatmul.f32.gmra.mxu0 %v550
        %v583 = vpop.f32.mrf.mxu0
        %v584 = vadd.f32 0.0, %v583
        %585 = vdwg.mxu0
        %586 = vmatpush.msra.mxu0 0.0
        %587 = vmatpush.msra.mxu0 0.0
        %588 = vmatpush.msra.mxu0 0.0
        %589 = vmatpush.msra.mxu0 0.0
        %590 = vmatpush.msra.mxu0 0.0
        %591 = vmatpush.msra.mxu0 0.0
        %592 = vmatpush.msra.mxu0 0.0
        %593 = vmatpush.msra.mxu0 0.0
        %594 = vmatpush.msra.mxu0 0.0
        %595 = vmatpush.msra.mxu0 0.0
        %596 = vmatpush.msra.mxu0 0.0
        %597 = vmatpush.msra.mxu0 0.0
        %598 = vmatpush.msra.mxu0 0.0
        %599 = vmatpush.msra.mxu0 0.0
        %600 = vmatpush.msra.mxu0 0.0
        %601 = vmatpush.msra.mxu0 %v555
        %602 = vmatmul.f32.gmra.mxu0 %v541
        %v603 = vpop.f32.mrf.mxu0
        %v604 = vadd.f32 0.0, %v603
        %605 = vmatmul.f32.gmra.mxu0 %v544
        %v606 = vpop.f32.mrf.mxu0
        %v607 = vadd.f32 0.0, %v606
        %608 = vmatmul.f32.gmra.mxu0 %v547
        %v609 = vpop.f32.mrf.mxu0
        %v610 = vadd.f32 0.0, %v609
        %611 = vmatmul.f32.gmra.mxu0 %v550
        %v612 = vpop.f32.mrf.mxu0
        %v613 = vadd.f32 0.0, %v612
        %614 = vdwg.mxu0
        %615 = vst [vmem:[#allocation1] ss:$2 sm:$0xff] %v511
        %v616 = vld.sshfl [vmem:[#allocation1] sm:$0xff pattern:$0x75316420]
        %v617 = vld.sshfl [vmem:[#allocation1 + $0x8] sm:$0xff pattern:$0x75316420]
        %v619 = vsel %vm539, %v512, 0
        %v622 = vsel %vm539, %v513, 0
        %v625 = vsel %vm539, %v514, 0
        %v628 = vsel %vm539, %v515, 0
        %v630 = vsel %vm552, %v616, 0
        %v632 = vsel %vm552, %v617, 0
        %634 = vmatpush.msra.mxu0 0.0
        %635 = vmatpush.msra.mxu0 0.0
        %636 = vmatpush.msra.mxu0 0.0
        %637 = vmatpush.msra.mxu0 0.0
        %638 = vmatpush.msra.mxu0 0.0
        %639 = vmatpush.msra.mxu0 0.0
        %640 = vmatpush.msra.mxu0 0.0
        %641 = vmatpush.msra.mxu0 0.0
        %642 = vmatpush.msra.mxu0 0.0
        %643 = vmatpush.msra.mxu0 0.0
        %644 = vmatpush.msra.mxu0 0.0
        %645 = vmatpush.msra.mxu0 0.0
        %646 = vmatpush.msra.mxu0 0.0
        %647 = vmatpush.msra.mxu0 0.0
        %648 = vmatpush.msra.mxu0 0.0
        %649 = vmatpush.msra.mxu0 %v630
        %650 = vmatmul.f32.gmra.mxu0 %v619
        %v651 = vpop.f32.mrf.mxu0
        %v652 = vadd.f32 %v575, %v651
        %653 = vmatmul.f32.gmra.mxu0 %v622
        %v654 = vpop.f32.mrf.mxu0
        %v655 = vadd.f32 %v578, %v654
        %656 = vmatmul.f32.gmra.mxu0 %v625
        %v657 = vpop.f32.mrf.mxu0
        %v658 = vadd.f32 %v581, %v657
        %659 = vmatmul.f32.gmra.mxu0 %v628
        %v660 = vpop.f32.mrf.mxu0
        %v661 = vadd.f32 %v584, %v660
        %662 = vdwg.mxu0
        %663 = vmatpush.msra.mxu0 0.0
        %664 = vmatpush.msra.mxu0 0.0
        %665 = vmatpush.msra.mxu0 0.0
        %666 = vmatpush.msra.mxu0 0.0
        %667 = vmatpush.msra.mxu0 0.0
        %668 = vmatpush.msra.mxu0 0.0
        %669 = vmatpush.msra.mxu0 0.0
        %670 = vmatpush.msra.mxu0 0.0
        %671 = vmatpush.msra.mxu0 0.0
        %672 = vmatpush.msra.mxu0 0.0
        %673 = vmatpush.msra.mxu0 0.0
        %674 = vmatpush.msra.mxu0 0.0
        %675 = vmatpush.msra.mxu0 0.0
        %676 = vmatpush.msra.mxu0 0.0
        %677 = vmatpush.msra.mxu0 0.0
        %678 = vmatpush.msra.mxu0 %v632
        %679 = vmatmul.f32.gmra.mxu0 %v619
        %v680 = vpop.f32.mrf.mxu0
        %v681 = vadd.f32 %v604, %v680
        %682 = vmatmul.f32.gmra.mxu0 %v622
        %v683 = vpop.f32.mrf.mxu0
        %v684 = vadd.f32 %v607, %v683
        %685 = vmatmul.f32.gmra.mxu0 %v625
        %v686 = vpop.f32.mrf.mxu0
        %v687 = vadd.f32 %v610, %v686
        %688 = vmatmul.f32.gmra.mxu0 %v628
        %v689 = vpop.f32.mrf.mxu0
        %v690 = vadd.f32 %v613, %v689
        %691 = vdwg.mxu0
        %v692 = vld [vmem:[%s478] sm:$0x77]
        %v693 = vld [vmem:[%s478 + $0x8] sm:$0x7]
        %s694 = scalar_lea.vmem %s420, 192 [#allocation2]
        %v695 = vld [vmem:[%s694] sm:$0xff]
        %v696 = vld [vmem:[%s694 + $0x8] sm:$0xff]
        %v697 = vld [vmem:[%s694 + $0x10] sm:$0xff]
        %v698 = vld [vmem:[%s694 + $0x18] sm:$0xff]
        %701 = vst [vmem:[#allocation1] ss:$2 sm:$0xff] %v692
        %s702 = scalar_lea.vmem [#allocation1], 16
        %703 = vst [vmem:[%s702] ss:$2 sm:$0xff] %v693
        %v704 = vld.sshfl [vmem:[#allocation1] sm:$0xff pattern:$0x75316420]
        %v705 = vld.sshfl [vmem:[#allocation1 + $0x8] sm:$0xff pattern:$0x75316420]
        %v706 = vld.sshfl [vmem:[#allocation1 + $0x10] sm:$0xff pattern:$0x75316420]
        %707 = vrot.lane.b32.xlu0 %v704, 96
        %v708 = vpop.permute.xlu0 %707
        %709 = vrot.lane.b32.xlu0 %v705, 96
        %v710 = vpop.permute.xlu0 %709
        %711 = vrot.lane.b32.xlu0 %v706, 96
        %v712 = vpop.permute.xlu0 %711
        %vm713 = vcmask 785408
        %v714 = vsel %vm713, %v708, %v710
        %v715 = vsel %vm713, %v710, %v712
        %v717 = vsel %vm539, %v695, 0
        %v720 = vsel %vm539, %v696, 0
        %v723 = vsel %vm539, %v697, 0
        %v726 = vsel %vm539, %v698, 0
        %v728 = vsel %vm552, %v714, 0
        %v730 = vsel %vm552, %v715, 0
        %732 = vmatpush.msra.mxu0 0.0
        %733 = vmatpush.msra.mxu0 0.0
        %734 = vmatpush.msra.mxu0 0.0
        %735 = vmatpush.msra.mxu0 0.0
        %736 = vmatpush.msra.mxu0 0.0
        %737 = vmatpush.msra.mxu0 0.0
        %738 = vmatpush.msra.mxu0 0.0
        %739 = vmatpush.msra.mxu0 0.0
        %740 = vmatpush.msra.mxu0 0.0
        %741 = vmatpush.msra.mxu0 0.0
        %742 = vmatpush.msra.mxu0 0.0
        %743 = vmatpush.msra.mxu0 0.0
        %744 = vmatpush.msra.mxu0 0.0
        %745 = vmatpush.msra.mxu0 0.0
        %746 = vmatpush.msra.mxu0 0.0
        %747 = vmatpush.msra.mxu0 %v728
        %748 = vmatmul.f32.gmra.mxu0 %v717
        %v749 = vpop.f32.mrf.mxu0
        %v750 = vadd.f32 0.0, %v749
        %751 = vmatmul.f32.gmra.mxu0 %v720
        %v752 = vpop.f32.mrf.mxu0
        %v753 = vadd.f32 0.0, %v752
        %754 = vmatmul.f32.gmra.mxu0 %v723
        %v755 = vpop.f32.mrf.mxu0
        %v756 = vadd.f32 0.0, %v755
        %757 = vmatmul.f32.gmra.mxu0 %v726
        %v758 = vpop.f32.mrf.mxu0
        %v759 = vadd.f32 0.0, %v758
        %760 = vdwg.mxu0
        %761 = vmatpush.msra.mxu0 0.0
        %762 = vmatpush.msra.mxu0 0.0
        %763 = vmatpush.msra.mxu0 0.0
        %764 = vmatpush.msra.mxu0 0.0
        %765 = vmatpush.msra.mxu0 0.0
        %766 = vmatpush.msra.mxu0 0.0
        %767 = vmatpush.msra.mxu0 0.0
        %768 = vmatpush.msra.mxu0 0.0
        %769 = vmatpush.msra.mxu0 0.0
        %770 = vmatpush.msra.mxu0 0.0
        %771 = vmatpush.msra.mxu0 0.0
        %772 = vmatpush.msra.mxu0 0.0
        %773 = vmatpush.msra.mxu0 0.0
        %774 = vmatpush.msra.mxu0 0.0
        %775 = vmatpush.msra.mxu0 0.0
        %776 = vmatpush.msra.mxu0 %v730
        %777 = vmatmul.f32.gmra.mxu0 %v717
        %v778 = vpop.f32.mrf.mxu0
        %v779 = vadd.f32 0.0, %v778
        %780 = vmatmul.f32.gmra.mxu0 %v720
        %v781 = vpop.f32.mrf.mxu0
        %v782 = vadd.f32 0.0, %v781
        %783 = vmatmul.f32.gmra.mxu0 %v723
        %v784 = vpop.f32.mrf.mxu0
        %v785 = vadd.f32 0.0, %v784
        %786 = vmatmul.f32.gmra.mxu0 %v726
        %v787 = vpop.f32.mrf.mxu0
        %v788 = vadd.f32 0.0, %v787
        %789 = vdwg.mxu0
        %v790 = vadd.f32 %v652, %v750
        %v791 = vadd.f32 %v681, %v779
        %v792 = vadd.f32 %v655, %v753
        %v793 = vadd.f32 %v684, %v782
        %v794 = vadd.f32 %v658, %v756
        %v795 = vadd.f32 %v687, %v785
        %v796 = vadd.f32 %v661, %v759
        %v797 = vadd.f32 %v690, %v788
        %v798 = vld [vmem:[%s483] sm:$0x77]
        %s799 = scalar_lea.vmem %s420, 32 [#allocation2]
        %v800 = vld [vmem:[%s799] sm:$0xff]
        %v801 = vld [vmem:[%s799 + $0x8] sm:$0xff]
        %v802 = vld [vmem:[%s799 + $0x10] sm:$0xff]
        %v803 = vld [vmem:[%s799 + $0x18] sm:$0xff]
        %805 = vst [vmem:[#allocation1] ss:$2 sm:$0xff] %v798
        %v806 = vld.sshfl [vmem:[#allocation1] sm:$0xff pattern:$0x75316420]
        %v807 = vld.sshfl [vmem:[#allocation1 + $0x8] sm:$0xff pattern:$0x75316420]
        %v809 = vsel %vm539, %v800, 0
        %v812 = vsel %vm539, %v801, 0
        %v815 = vsel %vm539, %v802, 0
        %v818 = vsel %vm539, %v803, 0
        %v820 = vsel %vm552, %v806, 0
        %v822 = vsel %vm552, %v807, 0
        %824 = vmatpush.msra.mxu0 0.0
        %825 = vmatpush.msra.mxu0 0.0
        %826 = vmatpush.msra.mxu0 0.0
        %827 = vmatpush.msra.mxu0 0.0
        %828 = vmatpush.msra.mxu0 0.0
        %829 = vmatpush.msra.mxu0 0.0
        %830 = vmatpush.msra.mxu0 0.0
        %831 = vmatpush.msra.mxu0 0.0
        %832 = vmatpush.msra.mxu0 0.0
        %833 = vmatpush.msra.mxu0 0.0
        %834 = vmatpush.msra.mxu0 0.0
        %835 = vmatpush.msra.mxu0 0.0
        %836 = vmatpush.msra.mxu0 0.0
        %837 = vmatpush.msra.mxu0 0.0
        %838 = vmatpush.msra.mxu0 0.0
        %839 = vmatpush.msra.mxu0 %v820
        %840 = vmatmul.f32.gmra.mxu0 %v809
        %v841 = vpop.f32.mrf.mxu0
        %v842 = vadd.f32 0.0, %v841
        %843 = vmatmul.f32.gmra.mxu0 %v812
        %v844 = vpop.f32.mrf.mxu0
        %v845 = vadd.f32 0.0, %v844
        %846 = vmatmul.f32.gmra.mxu0 %v815
        %v847 = vpop.f32.mrf.mxu0
        %v848 = vadd.f32 0.0, %v847
        %849 = vmatmul.f32.gmra.mxu0 %v818
        %v850 = vpop.f32.mrf.mxu0
        %v851 = vadd.f32 0.0, %v850
        %852 = vdwg.mxu0
        %853 = vmatpush.msra.mxu0 0.0
        %854 = vmatpush.msra.mxu0 0.0
        %855 = vmatpush.msra.mxu0 0.0
        %856 = vmatpush.msra.mxu0 0.0
        %857 = vmatpush.msra.mxu0 0.0
        %858 = vmatpush.msra.mxu0 0.0
        %859 = vmatpush.msra.mxu0 0.0
        %860 = vmatpush.msra.mxu0 0.0
        %861 = vmatpush.msra.mxu0 0.0
        %862 = vmatpush.msra.mxu0 0.0
        %863 = vmatpush.msra.mxu0 0.0
        %864 = vmatpush.msra.mxu0 0.0
        %865 = vmatpush.msra.mxu0 0.0
        %866 = vmatpush.msra.mxu0 0.0
        %867 = vmatpush.msra.mxu0 0.0
        %868 = vmatpush.msra.mxu0 %v822
        %869 = vmatmul.f32.gmra.mxu0 %v809
        %v870 = vpop.f32.mrf.mxu0
        %v871 = vadd.f32 0.0, %v870
        %872 = vmatmul.f32.gmra.mxu0 %v812
        %v873 = vpop.f32.mrf.mxu0
        %v874 = vadd.f32 0.0, %v873
        %875 = vmatmul.f32.gmra.mxu0 %v815
        %v876 = vpop.f32.mrf.mxu0
        %v877 = vadd.f32 0.0, %v876
        %878 = vmatmul.f32.gmra.mxu0 %v818
        %v879 = vpop.f32.mrf.mxu0
        %v880 = vadd.f32 0.0, %v879
        %881 = vdwg.mxu0
        %v882 = vadd.f32 %v790, %v842
        %v883 = vadd.f32 %v791, %v871
        %v884 = vadd.f32 %v792, %v845
        %v885 = vadd.f32 %v793, %v874
        %v886 = vadd.f32 %v794, %v848
        %v887 = vadd.f32 %v795, %v877
        %v888 = vadd.f32 %v796, %v851
        %v889 = vadd.f32 %v797, %v880
        %v890 = vld [vmem:[%s483] sm:$0x77]
        %v891 = vld [vmem:[%s483 + $0x8] sm:$0x7]
        %s892 = scalar_lea.vmem %s420, 128 [#allocation2]
        %v893 = vld [vmem:[%s892] sm:$0xff]
        %v894 = vld [vmem:[%s892 + $0x8] sm:$0xff]
        %v895 = vld [vmem:[%s892 + $0x10] sm:$0xff]
        %v896 = vld [vmem:[%s892 + $0x18] sm:$0xff]
        %899 = vst [vmem:[#allocation1] ss:$2 sm:$0xff] %v890
        %s900 = scalar_lea.vmem [#allocation1], 16
        %901 = vst [vmem:[%s900] ss:$2 sm:$0xff] %v891
        %v902 = vld.sshfl [vmem:[#allocation1] sm:$0xff pattern:$0x75316420]
        %v903 = vld.sshfl [vmem:[#allocation1 + $0x8] sm:$0xff pattern:$0x75316420]
        %v904 = vld.sshfl [vmem:[#allocation1 + $0x10] sm:$0xff pattern:$0x75316420]
        %905 = vrot.lane.b32.xlu0 %v902, 112
        %v906 = vpop.permute.xlu0 %905
        %907 = vrot.lane.b32.xlu0 %v903, 112
        %v908 = vpop.permute.xlu0 %907
        %909 = vrot.lane.b32.xlu0 %v904, 112
        %v910 = vpop.permute.xlu0 %909
        %v911 = vsel %vm536, %v906, %v908
        %v912 = vsel %vm536, %v908, %v910
        %v914 = vsel %vm539, %v893, 0
        %v917 = vsel %vm539, %v894, 0
        %v920 = vsel %vm539, %v895, 0
        %v923 = vsel %vm539, %v896, 0
        %v925 = vsel %vm552, %v911, 0
        %v927 = vsel %vm552, %v912, 0
        %929 = vmatpush.msra.mxu0 0.0
        %930 = vmatpush.msra.mxu0 0.0
        %931 = vmatpush.msra.mxu0 0.0
        %932 = vmatpush.msra.mxu0 0.0
        %933 = vmatpush.msra.mxu0 0.0
        %934 = vmatpush.msra.mxu0 0.0
        %935 = vmatpush.msra.mxu0 0.0
        %936 = vmatpush.msra.mxu0 0.0
        %937 = vmatpush.msra.mxu0 0.0
        %938 = vmatpush.msra.mxu0 0.0
        %939 = vmatpush.msra.mxu0 0.0
        %940 = vmatpush.msra.mxu0 0.0
        %941 = vmatpush.msra.mxu0 0.0
        %942 = vmatpush.msra.mxu0 0.0
        %943 = vmatpush.msra.mxu0 0.0
        %944 = vmatpush.msra.mxu0 %v925
        %945 = vmatmul.f32.gmra.mxu0 %v914
        %v946 = vpop.f32.mrf.mxu0
        %v947 = vadd.f32 0.0, %v946
        %948 = vmatmul.f32.gmra.mxu0 %v917
        %v949 = vpop.f32.mrf.mxu0
        %v950 = vadd.f32 0.0, %v949
        %951 = vmatmul.f32.gmra.mxu0 %v920
        %v952 = vpop.f32.mrf.mxu0
        %v953 = vadd.f32 0.0, %v952
        %954 = vmatmul.f32.gmra.mxu0 %v923
        %v955 = vpop.f32.mrf.mxu0
        %v956 = vadd.f32 0.0, %v955
        %957 = vdwg.mxu0
        %958 = vmatpush.msra.mxu0 0.0
        %959 = vmatpush.msra.mxu0 0.0
        %960 = vmatpush.msra.mxu0 0.0
        %961 = vmatpush.msra.mxu0 0.0
        %962 = vmatpush.msra.mxu0 0.0
        %963 = vmatpush.msra.mxu0 0.0
        %964 = vmatpush.msra.mxu0 0.0
        %965 = vmatpush.msra.mxu0 0.0
        %966 = vmatpush.msra.mxu0 0.0
        %967 = vmatpush.msra.mxu0 0.0
        %968 = vmatpush.msra.mxu0 0.0
        %969 = vmatpush.msra.mxu0 0.0
        %970 = vmatpush.msra.mxu0 0.0
        %971 = vmatpush.msra.mxu0 0.0
        %972 = vmatpush.msra.mxu0 0.0
        %973 = vmatpush.msra.mxu0 %v927
        %974 = vmatmul.f32.gmra.mxu0 %v914
        %v975 = vpop.f32.mrf.mxu0
        %v976 = vadd.f32 0.0, %v975
        %977 = vmatmul.f32.gmra.mxu0 %v917
        %v978 = vpop.f32.mrf.mxu0
        %v979 = vadd.f32 0.0, %v978
        %980 = vmatmul.f32.gmra.mxu0 %v920
        %v981 = vpop.f32.mrf.mxu0
        %v982 = vadd.f32 0.0, %v981
        %983 = vmatmul.f32.gmra.mxu0 %v923
        %v984 = vpop.f32.mrf.mxu0
        %v985 = vadd.f32 0.0, %v984
        %986 = vdwg.mxu0
        %v987 = vadd.f32 %v882, %v947
        %v988 = vadd.f32 %v883, %v976
        %v989 = vadd.f32 %v884, %v950
        %v990 = vadd.f32 %v885, %v979
        %v991 = vadd.f32 %v886, %v953
        %v992 = vadd.f32 %v887, %v982
        %v993 = vadd.f32 %v888, %v956
        %v994 = vadd.f32 %v889, %v985
        %v995 = vld [vmem:[%s483] sm:$0x77]
        %v996 = vld [vmem:[%s483 + $0x8] sm:$0x7]
        %s997 = scalar_lea.vmem %s420, 224 [#allocation2]
        %v998 = vld [vmem:[%s997] sm:$0xff]
        %v999 = vld [vmem:[%s997 + $0x8] sm:$0xff]
        %v1000 = vld [vmem:[%s997 + $0x10] sm:$0xff]
        %v1001 = vld [vmem:[%s997 + $0x18] sm:$0xff]
        %1004 = vst [vmem:[#allocation1] ss:$2 sm:$0xff] %v995
        %s1005 = scalar_lea.vmem [#allocation1], 16
        %1006 = vst [vmem:[%s1005] ss:$2 sm:$0xff] %v996
        %v1007 = vld.sshfl [vmem:[#allocation1] sm:$0xff pattern:$0x75316420]
        %v1008 = vld.sshfl [vmem:[#allocation1 + $0x8] sm:$0xff pattern:$0x75316420]
        %v1009 = vld.sshfl [vmem:[#allocation1 + $0x10] sm:$0xff pattern:$0x75316420]
        %1010 = vrot.lane.b32.xlu0 %v1007, 96
        %v1011 = vpop.permute.xlu0 %1010
        %1012 = vrot.lane.b32.xlu0 %v1008, 96
        %v1013 = vpop.permute.xlu0 %1012
        %1014 = vrot.lane.b32.xlu0 %v1009, 96
        %v1015 = vpop.permute.xlu0 %1014
        %v1016 = vsel %vm713, %v1011, %v1013
        %v1017 = vsel %vm713, %v1013, %v1015
        %v1019 = vsel %vm539, %v998, 0
        %v1022 = vsel %vm539, %v999, 0
        %v1025 = vsel %vm539, %v1000, 0
        %v1028 = vsel %vm539, %v1001, 0
        %v1030 = vsel %vm552, %v1016, 0
        %v1032 = vsel %vm552, %v1017, 0
        %1034 = vmatpush.msra.mxu0 0.0
        %1035 = vmatpush.msra.mxu0 0.0
        %1036 = vmatpush.msra.mxu0 0.0
        %1037 = vmatpush.msra.mxu0 0.0
        %1038 = vmatpush.msra.mxu0 0.0
        %1039 = vmatpush.msra.mxu0 0.0
        %1040 = vmatpush.msra.mxu0 0.0
        %1041 = vmatpush.msra.mxu0 0.0
        %1042 = vmatpush.msra.mxu0 0.0
        %1043 = vmatpush.msra.mxu0 0.0
        %1044 = vmatpush.msra.mxu0 0.0
        %1045 = vmatpush.msra.mxu0 0.0
        %1046 = vmatpush.msra.mxu0 0.0
        %1047 = vmatpush.msra.mxu0 0.0
        %1048 = vmatpush.msra.mxu0 0.0
        %1049 = vmatpush.msra.mxu0 %v1030
        %1050 = vmatmul.f32.gmra.mxu0 %v1019
        %v1051 = vpop.f32.mrf.mxu0
        %v1052 = vadd.f32 0.0, %v1051
        %1053 = vmatmul.f32.gmra.mxu0 %v1022
        %v1054 = vpop.f32.mrf.mxu0
        %v1055 = vadd.f32 0.0, %v1054
        %1056 = vmatmul.f32.gmra.mxu0 %v1025
        %v1057 = vpop.f32.mrf.mxu0
        %v1058 = vadd.f32 0.0, %v1057
        %1059 = vmatmul.f32.gmra.mxu0 %v1028
        %v1060 = vpop.f32.mrf.mxu0
        %v1061 = vadd.f32 0.0, %v1060
        %1062 = vdwg.mxu0
        %1063 = vmatpush.msra.mxu0 0.0
        %1064 = vmatpush.msra.mxu0 0.0
        %1065 = vmatpush.msra.mxu0 0.0
        %1066 = vmatpush.msra.mxu0 0.0
        %1067 = vmatpush.msra.mxu0 0.0
        %1068 = vmatpush.msra.mxu0 0.0
        %1069 = vmatpush.msra.mxu0 0.0
        %1070 = vmatpush.msra.mxu0 0.0
        %1071 = vmatpush.msra.mxu0 0.0
        %1072 = vmatpush.msra.mxu0 0.0
        %1073 = vmatpush.msra.mxu0 0.0
        %1074 = vmatpush.msra.mxu0 0.0
        %1075 = vmatpush.msra.mxu0 0.0
        %1076 = vmatpush.msra.mxu0 0.0
        %1077 = vmatpush.msra.mxu0 0.0
        %1078 = vmatpush.msra.mxu0 %v1032
        %1079 = vmatmul.f32.gmra.mxu0 %v1019
        %v1080 = vpop.f32.mrf.mxu0
        %v1081 = vadd.f32 0.0, %v1080
        %1082 = vmatmul.f32.gmra.mxu0 %v1022
        %v1083 = vpop.f32.mrf.mxu0
        %v1084 = vadd.f32 0.0, %v1083
        %1085 = vmatmul.f32.gmra.mxu0 %v1025
        %v1086 = vpop.f32.mrf.mxu0
        %v1087 = vadd.f32 0.0, %v1086
        %1088 = vmatmul.f32.gmra.mxu0 %v1028
        %v1089 = vpop.f32.mrf.mxu0
        %v1090 = vadd.f32 0.0, %v1089
        %1091 = vdwg.mxu0
        %v1092 = vadd.f32 %v987, %v1052
        %v1093 = vadd.f32 %v988, %v1081
        %v1094 = vadd.f32 %v989, %v1055
        %v1095 = vadd.f32 %v990, %v1084
        %v1096 = vadd.f32 %v991, %v1058
        %v1097 = vadd.f32 %v992, %v1087
        %v1098 = vadd.f32 %v993, %v1061
        %v1099 = vadd.f32 %v994, %v1090
        %v1100 = vld [vmem:[%s488] sm:$0x77]
        %s1101 = scalar_lea.vmem %s420, 64 [#allocation2]
        %v1102 = vld [vmem:[%s1101] sm:$0xff]
        %v1103 = vld [vmem:[%s1101 + $0x8] sm:$0xff]
        %v1104 = vld [vmem:[%s1101 + $0x10] sm:$0xff]
        %v1105 = vld [vmem:[%s1101 + $0x18] sm:$0xff]
        %1107 = vst [vmem:[#allocation1] ss:$2 sm:$0xff] %v1100
        %v1108 = vld.sshfl [vmem:[#allocation1] sm:$0xff pattern:$0x75316420]
        %v1109 = vld.sshfl [vmem:[#allocation1 + $0x8] sm:$0xff pattern:$0x75316420]
        %v1111 = vsel %vm539, %v1102, 0
        %v1114 = vsel %vm539, %v1103, 0
        %v1117 = vsel %vm539, %v1104, 0
        %v1120 = vsel %vm539, %v1105, 0
        %v1122 = vsel %vm552, %v1108, 0
        %v1124 = vsel %vm552, %v1109, 0
        %1126 = vmatpush.msra.mxu0 0.0
        %1127 = vmatpush.msra.mxu0 0.0
        %1128 = vmatpush.msra.mxu0 0.0
        %1129 = vmatpush.msra.mxu0 0.0
        %1130 = vmatpush.msra.mxu0 0.0
        %1131 = vmatpush.msra.mxu0 0.0
        %1132 = vmatpush.msra.mxu0 0.0
        %1133 = vmatpush.msra.mxu0 0.0
        %1134 = vmatpush.msra.mxu0 0.0
        %1135 = vmatpush.msra.mxu0 0.0
        %1136 = vmatpush.msra.mxu0 0.0
        %1137 = vmatpush.msra.mxu0 0.0
        %1138 = vmatpush.msra.mxu0 0.0
        %1139 = vmatpush.msra.mxu0 0.0
        %1140 = vmatpush.msra.mxu0 0.0
        %1141 = vmatpush.msra.mxu0 %v1122
        %1142 = vmatmul.f32.gmra.mxu0 %v1111
        %v1143 = vpop.f32.mrf.mxu0
        %v1144 = vadd.f32 0.0, %v1143
        %1145 = vmatmul.f32.gmra.mxu0 %v1114
        %v1146 = vpop.f32.mrf.mxu0
        %v1147 = vadd.f32 0.0, %v1146
        %1148 = vmatmul.f32.gmra.mxu0 %v1117
        %v1149 = vpop.f32.mrf.mxu0
        %v1150 = vadd.f32 0.0, %v1149
        %1151 = vmatmul.f32.gmra.mxu0 %v1120
        %v1152 = vpop.f32.mrf.mxu0
        %v1153 = vadd.f32 0.0, %v1152
        %1154 = vdwg.mxu0
        %1155 = vmatpush.msra.mxu0 0.0
        %1156 = vmatpush.msra.mxu0 0.0
        %1157 = vmatpush.msra.mxu0 0.0
        %1158 = vmatpush.msra.mxu0 0.0
        %1159 = vmatpush.msra.mxu0 0.0
        %1160 = vmatpush.msra.mxu0 0.0
        %1161 = vmatpush.msra.mxu0 0.0
        %1162 = vmatpush.msra.mxu0 0.0
        %1163 = vmatpush.msra.mxu0 0.0
        %1164 = vmatpush.msra.mxu0 0.0
        %1165 = vmatpush.msra.mxu0 0.0
        %1166 = vmatpush.msra.mxu0 0.0
        %1167 = vmatpush.msra.mxu0 0.0
        %1168 = vmatpush.msra.mxu0 0.0
        %1169 = vmatpush.msra.mxu0 0.0
        %1170 = vmatpush.msra.mxu0 %v1124
        %1171 = vmatmul.f32.gmra.mxu0 %v1111
        %v1172 = vpop.f32.mrf.mxu0
        %v1173 = vadd.f32 0.0, %v1172
        %1174 = vmatmul.f32.gmra.mxu0 %v1114
        %v1175 = vpop.f32.mrf.mxu0
        %v1176 = vadd.f32 0.0, %v1175
        %1177 = vmatmul.f32.gmra.mxu0 %v1117
        %v1178 = vpop.f32.mrf.mxu0
        %v1179 = vadd.f32 0.0, %v1178
        %1180 = vmatmul.f32.gmra.mxu0 %v1120
        %v1181 = vpop.f32.mrf.mxu0
        %v1182 = vadd.f32 0.0, %v1181
        %1183 = vdwg.mxu0
        %v1184 = vadd.f32 %v1092, %v1144
        %v1185 = vadd.f32 %v1093, %v1173
        %v1186 = vadd.f32 %v1094, %v1147
        %v1187 = vadd.f32 %v1095, %v1176
        %v1188 = vadd.f32 %v1096, %v1150
        %v1189 = vadd.f32 %v1097, %v1179
        %v1190 = vadd.f32 %v1098, %v1153
        %v1191 = vadd.f32 %v1099, %v1182
        %v1192 = vld [vmem:[%s488] sm:$0x77]
        %v1193 = vld [vmem:[%s488 + $0x8] sm:$0x7]
        %s1194 = scalar_lea.vmem %s420, 160 [#allocation2]
        %v1195 = vld [vmem:[%s1194] sm:$0xff]
        %v1196 = vld [vmem:[%s1194 + $0x8] sm:$0xff]
        %v1197 = vld [vmem:[%s1194 + $0x10] sm:$0xff]
        %v1198 = vld [vmem:[%s1194 + $0x18] sm:$0xff]
        %1201 = vst [vmem:[#allocation1] ss:$2 sm:$0xff] %v1192
        %s1202 = scalar_lea.vmem [#allocation1], 16
        %1203 = vst [vmem:[%s1202] ss:$2 sm:$0xff] %v1193
        %v1204 = vld.sshfl [vmem:[#allocation1] sm:$0xff pattern:$0x75316420]
        %v1205 = vld.sshfl [vmem:[#allocation1 + $0x8] sm:$0xff pattern:$0x75316420]
        %v1206 = vld.sshfl [vmem:[#allocation1 + $0x10] sm:$0xff pattern:$0x75316420]
        %1207 = vrot.lane.b32.xlu0 %v1204, 112
        %v1208 = vpop.permute.xlu0 %1207
        %1209 = vrot.lane.b32.xlu0 %v1205, 112
        %v1210 = vpop.permute.xlu0 %1209
        %1211 = vrot.lane.b32.xlu0 %v1206, 112
        %v1212 = vpop.permute.xlu0 %1211
        %v1213 = vsel %vm536, %v1208, %v1210
        %v1214 = vsel %vm536, %v1210, %v1212
        %v1216 = vsel %vm539, %v1195, 0
        %v1219 = vsel %vm539, %v1196, 0
        %v1222 = vsel %vm539, %v1197, 0
        %v1225 = vsel %vm539, %v1198, 0
        %v1227 = vsel %vm552, %v1213, 0
        %v1229 = vsel %vm552, %v1214, 0
        %1231 = vmatpush.msra.mxu0 0.0
        %1232 = vmatpush.msra.mxu0 0.0
        %1233 = vmatpush.msra.mxu0 0.0
        %1234 = vmatpush.msra.mxu0 0.0
        %1235 = vmatpush.msra.mxu0 0.0
        %1236 = vmatpush.msra.mxu0 0.0
        %1237 = vmatpush.msra.mxu0 0.0
        %1238 = vmatpush.msra.mxu0 0.0
        %1239 = vmatpush.msra.mxu0 0.0
        %1240 = vmatpush.msra.mxu0 0.0
        %1241 = vmatpush.msra.mxu0 0.0
        %1242 = vmatpush.msra.mxu0 0.0
        %1243 = vmatpush.msra.mxu0 0.0
        %1244 = vmatpush.msra.mxu0 0.0
        %1245 = vmatpush.msra.mxu0 0.0
        %1246 = vmatpush.msra.mxu0 %v1227
        %1247 = vmatmul.f32.gmra.mxu0 %v1216
        %v1248 = vpop.f32.mrf.mxu0
        %v1249 = vadd.f32 0.0, %v1248
        %1250 = vmatmul.f32.gmra.mxu0 %v1219
        %v1251 = vpop.f32.mrf.mxu0
        %v1252 = vadd.f32 0.0, %v1251
        %1253 = vmatmul.f32.gmra.mxu0 %v1222
        %v1254 = vpop.f32.mrf.mxu0
        %v1255 = vadd.f32 0.0, %v1254
        %1256 = vmatmul.f32.gmra.mxu0 %v1225
        %v1257 = vpop.f32.mrf.mxu0
        %v1258 = vadd.f32 0.0, %v1257
        %1259 = vdwg.mxu0
        %1260 = vmatpush.msra.mxu0 0.0
        %1261 = vmatpush.msra.mxu0 0.0
        %1262 = vmatpush.msra.mxu0 0.0
        %1263 = vmatpush.msra.mxu0 0.0
        %1264 = vmatpush.msra.mxu0 0.0
        %1265 = vmatpush.msra.mxu0 0.0
        %1266 = vmatpush.msra.mxu0 0.0
        %1267 = vmatpush.msra.mxu0 0.0
        %1268 = vmatpush.msra.mxu0 0.0
        %1269 = vmatpush.msra.mxu0 0.0
        %1270 = vmatpush.msra.mxu0 0.0
        %1271 = vmatpush.msra.mxu0 0.0
        %1272 = vmatpush.msra.mxu0 0.0
        %1273 = vmatpush.msra.mxu0 0.0
        %1274 = vmatpush.msra.mxu0 0.0
        %1275 = vmatpush.msra.mxu0 %v1229
        %1276 = vmatmul.f32.gmra.mxu0 %v1216
        %v1277 = vpop.f32.mrf.mxu0
        %v1278 = vadd.f32 0.0, %v1277
        %1279 = vmatmul.f32.gmra.mxu0 %v1219
        %v1280 = vpop.f32.mrf.mxu0
        %v1281 = vadd.f32 0.0, %v1280
        %1282 = vmatmul.f32.gmra.mxu0 %v1222
        %v1283 = vpop.f32.mrf.mxu0
        %v1284 = vadd.f32 0.0, %v1283
        %1285 = vmatmul.f32.gmra.mxu0 %v1225
        %v1286 = vpop.f32.mrf.mxu0
        %v1287 = vadd.f32 0.0, %v1286
        %1288 = vdwg.mxu0
        %v1289 = vadd.f32 %v1184, %v1249
        %v1290 = vadd.f32 %v1185, %v1278
        %v1291 = vadd.f32 %v1186, %v1252
        %v1292 = vadd.f32 %v1187, %v1281
        %v1293 = vadd.f32 %v1188, %v1255
        %v1294 = vadd.f32 %v1189, %v1284
        %v1295 = vadd.f32 %v1190, %v1258
        %v1296 = vadd.f32 %v1191, %v1287
        %v1297 = vld [vmem:[%s488] sm:$0x77]
        %v1298 = vld [vmem:[%s488 + $0x8] sm:$0x7]
        %s1299 = scalar_lea.vmem %s420, 256 [#allocation2]
        %v1300 = vld [vmem:[%s1299] sm:$0xff]
        %v1301 = vld [vmem:[%s1299 + $0x8] sm:$0xff]
        %v1302 = vld [vmem:[%s1299 + $0x10] sm:$0xff]
        %v1303 = vld [vmem:[%s1299 + $0x18] sm:$0xff]
        %1306 = vst [vmem:[#allocation1] ss:$2 sm:$0xff] %v1297
        %s1307 = scalar_lea.vmem [#allocation1], 16
        %1308 = vst [vmem:[%s1307] ss:$2 sm:$0xff] %v1298
        %v1309 = vld.sshfl [vmem:[#allocation1] sm:$0xff pattern:$0x75316420]
        %v1310 = vld.sshfl [vmem:[#allocation1 + $0x8] sm:$0xff pattern:$0x75316420]
        %v1311 = vld.sshfl [vmem:[#allocation1 + $0x10] sm:$0xff pattern:$0x75316420]
        %1312 = vrot.lane.b32.xlu0 %v1309, 96
        %v1313 = vpop.permute.xlu0 %1312
        %1314 = vrot.lane.b32.xlu0 %v1310, 96
        %v1315 = vpop.permute.xlu0 %1314
        %1316 = vrot.lane.b32.xlu0 %v1311, 96
        %v1317 = vpop.permute.xlu0 %1316
        %v1318 = vsel %vm713, %v1313, %v1315
        %v1319 = vsel %vm713, %v1315, %v1317
        %v1321 = vsel %vm539, %v1300, 0
        %v1324 = vsel %vm539, %v1301, 0
        %v1327 = vsel %vm539, %v1302, 0
        %v1330 = vsel %vm539, %v1303, 0
        %v1332 = vsel %vm552, %v1318, 0
        %v1334 = vsel %vm552, %v1319, 0
        %1336 = vmatpush.msra.mxu0 0.0
        %1337 = vmatpush.msra.mxu0 0.0
        %1338 = vmatpush.msra.mxu0 0.0
        %1339 = vmatpush.msra.mxu0 0.0
        %1340 = vmatpush.msra.mxu0 0.0
        %1341 = vmatpush.msra.mxu0 0.0
        %1342 = vmatpush.msra.mxu0 0.0
        %1343 = vmatpush.msra.mxu0 0.0
        %1344 = vmatpush.msra.mxu0 0.0
        %1345 = vmatpush.msra.mxu0 0.0
        %1346 = vmatpush.msra.mxu0 0.0
        %1347 = vmatpush.msra.mxu0 0.0
        %1348 = vmatpush.msra.mxu0 0.0
        %1349 = vmatpush.msra.mxu0 0.0
        %1350 = vmatpush.msra.mxu0 0.0
        %1351 = vmatpush.msra.mxu0 %v1332
        %1352 = vmatmul.f32.gmra.mxu0 %v1321
        %v1353 = vpop.f32.mrf.mxu0
        %v1354 = vadd.f32 0.0, %v1353
        %1355 = vmatmul.f32.gmra.mxu0 %v1324
        %v1356 = vpop.f32.mrf.mxu0
        %v1357 = vadd.f32 0.0, %v1356
        %1358 = vmatmul.f32.gmra.mxu0 %v1327
        %v1359 = vpop.f32.mrf.mxu0
        %v1360 = vadd.f32 0.0, %v1359
        %1361 = vmatmul.f32.gmra.mxu0 %v1330
        %v1362 = vpop.f32.mrf.mxu0
        %v1363 = vadd.f32 0.0, %v1362
        %1364 = vdwg.mxu0
        %1365 = vmatpush.msra.mxu0 0.0
        %1366 = vmatpush.msra.mxu0 0.0
        %1367 = vmatpush.msra.mxu0 0.0
        %1368 = vmatpush.msra.mxu0 0.0
        %1369 = vmatpush.msra.mxu0 0.0
        %1370 = vmatpush.msra.mxu0 0.0
        %1371 = vmatpush.msra.mxu0 0.0
        %1372 = vmatpush.msra.mxu0 0.0
        %1373 = vmatpush.msra.mxu0 0.0
        %1374 = vmatpush.msra.mxu0 0.0
        %1375 = vmatpush.msra.mxu0 0.0
        %1376 = vmatpush.msra.mxu0 0.0
        %1377 = vmatpush.msra.mxu0 0.0
        %1378 = vmatpush.msra.mxu0 0.0
        %1379 = vmatpush.msra.mxu0 0.0
        %1380 = vmatpush.msra.mxu0 %v1334
        %1381 = vmatmul.f32.gmra.mxu0 %v1321
        %v1382 = vpop.f32.mrf.mxu0
        %v1383 = vadd.f32 0.0, %v1382
        %1384 = vmatmul.f32.gmra.mxu0 %v1324
        %v1385 = vpop.f32.mrf.mxu0
        %v1386 = vadd.f32 0.0, %v1385
        %1387 = vmatmul.f32.gmra.mxu0 %v1327
        %v1388 = vpop.f32.mrf.mxu0
        %v1389 = vadd.f32 0.0, %v1388
        %1390 = vmatmul.f32.gmra.mxu0 %v1330
        %v1391 = vpop.f32.mrf.mxu0
        %v1392 = vadd.f32 0.0, %v1391
        %1393 = vdwg.mxu0
        %v1394 = vadd.f32 %v1289, %v1354
        %v1395 = vadd.f32 %v1290, %v1383
        %v1396 = vadd.f32 %v1291, %v1357
        %v1397 = vadd.f32 %v1292, %v1386
        %v1398 = vadd.f32 %v1293, %v1360
        %v1399 = vadd.f32 %v1294, %v1389
        %v1400 = vadd.f32 %v1295, %v1363
        %v1401 = vadd.f32 %v1296, %v1392
        %1402 = vst [vmem:[%s499] sm:$0xff] %v1394
        %1403 = vst [vmem:[%s499 + $0x8] sm:$0xff] %v1395
        %1404 = vst [vmem:[%s499 + $0x10] sm:$0xff] %v1396
        %1405 = vst [vmem:[%s499 + $0x18] sm:$0xff] %v1397
        %1406 = vst [vmem:[%s499 + $0x20] sm:$0xff] %v1398
        %1407 = vst [vmem:[%s499 + $0x28] sm:$0xff] %v1399
        %1408 = vst [vmem:[%s499 + $0x30] sm:$0xff] %v1400
        %1409 = vst [vmem:[%s499 + $0x38] sm:$0xff] %v1401
        %v1410 = vadd.f32 %v1394, %v1395
        %1411 = vadd.xlane.f32.xlu0 %v1410
        %v1412 = vpop.xlane.xlu0 %1411
        %v1413 = vadd.f32 %v1396, %v1397
        %1414 = vadd.xlane.f32.xlu0 %v1413
        %v1415 = vpop.xlane.xlu0 %1414
        %v1416 = vadd.f32 %v1398, %v1399
        %1417 = vadd.xlane.f32.xlu0 %v1416
        %v1418 = vpop.xlane.xlu0 %1417
        %v1419 = vadd.f32 %v1400, %v1401
        %1420 = vadd.xlane.f32.xlu0 %v1419
        %v1421 = vpop.xlane.xlu0 %1420
        %vm1422 = vcmask 7168
        %1423 = vst.msk [vmem:[%s509] sm:$0xff] %vm1422, %v1412
        %1424 = vst.msk [vmem:[%s509 + $0x8] sm:$0xff] %vm1422, %v1415
        %1425 = vst.msk [vmem:[%s509 + $0x10] sm:$0xff] %vm1422, %v1418
        %1426 = vst.msk [vmem:[%s509 + $0x18] sm:$0xff] %vm1422, %v1421
        %v1427 = vmul.f32 %v1394, %v1394
        %v1428 = vmul.f32 %v1395, %v1395
        %v1429 = vmul.f32 %v1396, %v1396
        %v1430 = vmul.f32 %v1397, %v1397
        %v1431 = vmul.f32 %v1398, %v1398
        %v1432 = vmul.f32 %v1399, %v1399
        %v1433 = vmul.f32 %v1400, %v1400
        %v1434 = vmul.f32 %v1401, %v1401
        %v1435 = vadd.f32 %v1427, %v1428
        %1436 = vadd.xlane.f32.xlu0 %v1435
        %v1437 = vpop.xlane.xlu0 %1436
        %v1438 = vadd.f32 %v1429, %v1430
        %1439 = vadd.xlane.f32.xlu0 %v1438
        %v1440 = vpop.xlane.xlu0 %1439
        %v1441 = vadd.f32 %v1431, %v1432
        %1442 = vadd.xlane.f32.xlu0 %v1441
        %v1443 = vpop.xlane.xlu0 %1442
        %v1444 = vadd.f32 %v1433, %v1434
        %1445 = vadd.xlane.f32.xlu0 %v1444
        %v1446 = vpop.xlane.xlu0 %1445
        %vm1447 = vcmask 15368
        %1448 = vst.msk [vmem:[%s509] sm:$0xff] %vm1447, %v1437
        %1449 = vst.msk [vmem:[%s509 + $0x8] sm:$0xff] %vm1447, %v1440
        %1450 = vst.msk [vmem:[%s509 + $0x10] sm:$0xff] %vm1447, %v1443
        %1451 = vst.msk [vmem:[%s509 + $0x18] sm:$0xff] %vm1447, %v1446
        %s1452 = smul.u32 4, %s22
        %p1453 = scmp.lt.s32.totalorder %s21, 1
        %s1454 = scalar_select %p1453, %s21, 1
        %p1455 = scmp.lt.s32.totalorder %s1452, 7
        %s1456 = scalar_select %p1455, %s1452, 7
        %s1457 = smul.addr %s1456, 2
        %s1458 = smul.addr %s1454, 16
        %s1459 = sadd.s32 %s1457, %s1458
        %s1460 = smul.addr %s1459, 8
        %s1461 = scalar_lea.vmem %s4, %s1460
        %s1462 = smul.u32 4, %s22
        %p1463 = scmp.lt.s32.totalorder %s21, 1
        %s1464 = scalar_select %p1463, %s21, 1
        %p1465 = scmp.lt.s32.totalorder %s1462, 7
        %s1466 = scalar_select %p1465, %s1462, 7
        %s1467 = smul.addr %s1464, 8
        %s1468 = sadd.s32 %s1466, %s1467
        %s1469 = smul.addr %s1468, 8
        %s1470 = scalar_lea.vmem %s5, %s1469
        // Predicated region
        $region75: #{conv_unit_forward.2} parent=69 // pred_check
          %p1471 = pneg %p153
        $region76: #{conv_unit_forward.2} parent=69 // pred_check_branch
          %1473 = sbr.rel (%p1471) target = $region78
        $region77: #{conv_unit_forward.2} parent=69 // pred_region
          %s1474 = smul.u32 4, %s22
        $region78: #{conv_unit_forward.2} parent=69 // pred_fallthru
          _
        // Predicated region
        $region79: #{conv_unit_forward.2} parent=69 // pred_check
          %p1475 = pneg %p181
        $region80: #{conv_unit_forward.2} parent=69 // pred_check_branch
          %1477 = sbr.rel (%p1475) target = $region82
        $region81: #{conv_unit_forward.2} parent=69 // pred_region
          %s1478 = smul.u32 4, %s22
        $region82: #{conv_unit_forward.2} parent=69 // pred_fallthru
          _
      $region70: #{conv_unit_forward.2} parent=5 // pred_fallthru
        _
      %p1479 = scmp.le.s32.totalorder 2, %s12
      // Predicated region
      $region83: #{conv_unit_forward.2} parent=5 // pred_check
        %p1480 = pneg %p1479
      $region84: #{conv_unit_forward.2} parent=5 // pred_check_branch
        %1482 = sbr.rel (%p1480) target = $region86
      $region85: #{conv_unit_forward.2} parent=5 // pred_region
        %s1483 = ssub.s32 %s12, 2
        // Predicated region
        $region87: #{conv_unit_forward.2} parent=85 // pred_check
          %p1484 = pneg %p159
        $region88: #{conv_unit_forward.2} parent=85 // pred_check_branch
          %1486 = sbr.rel (%p1484) target = $region90
        $region89: #{conv_unit_forward.2} parent=85 // pred_region
          %s1487 = smul.u32 4, %s24
          %p1488 = scmp.lt.s32.totalorder %s23, 1
          %s1489 = scalar_select %p1488, %s23, 1
          %p1490 = scmp.lt.s32.totalorder %s1487, 7
          %s1491 = scalar_select %p1490, %s1487, 7
          %s1492 = smul.addr %s1491, 2
          %s1493 = smul.addr %s1489, 16
          %s1494 = sadd.s32 %s1492, %s1493
          %s1495 = smul.addr %s1494, 8
          %s1496 = scalar_lea.vmem %s4, %s1495
        $region90: #{conv_unit_forward.2} parent=85 // pred_fallthru
          _
        // Predicated region
        $region91: #{conv_unit_forward.2} parent=85 // pred_check
          %p1497 = pneg %p187
        $region92: #{conv_unit_forward.2} parent=85 // pred_check_branch
          %1499 = sbr.rel (%p1497) target = $region94
        $region93: #{conv_unit_forward.2} parent=85 // pred_region
          %s1500 = smul.u32 4, %s24
          %p1501 = scmp.lt.s32.totalorder %s23, 1
          %s1502 = scalar_select %p1501, %s23, 1
          %p1503 = scmp.lt.s32.totalorder %s1500, 7
          %s1504 = scalar_select %p1503, %s1500, 7
          %s1505 = smul.addr %s1502, 8
          %s1506 = sadd.s32 %s1504, %s1505
          %s1507 = smul.addr %s1506, 8
          %s1508 = scalar_lea.vmem %s5, %s1507
        $region94: #{conv_unit_forward.2} parent=85 // pred_fallthru
          _
      $region86: #{conv_unit_forward.2} parent=5 // pred_fallthru
        _
    $region6: #{conv_unit_forward.2} parent=1 // loop_footer
      %s16 = sadd.s32 1, %s12
    $region7: #{conv_unit_forward.2} parent=1 // loop_footer_branch
      %11 = sbr.rel target = $region3
    $region8: #{conv_unit_forward.2} parent=1 // loop_exit
      _

</llo_original>
